<compile_context>
chip_gen: v5e
topology: v5e:2x2
jax: 0.10.0
libtpu: 0.0.40
codegen_flags: <defaults>
</compile_context>

<pallas_src>
import functools

import jax
import jax.numpy as jnp
from jax import lax
from jax.experimental import pallas as pl
from jax.experimental.pallas import tpu as pltpu

EMBED = 128           # embed_size
NFILT = 100           # num_filters (PyTorch)
FPAD = 128            # filters padded to a full lane tile
KS = (3, 4, 5)
NBLK = 7              # K=256 weight blocks: k3->(pair,single) k4->(pair,pair) k5->(pair,pair,single)
HIDDEN = 30
NCLASS = 3
OUT_PAD = 128         # lane-dense padded head output (logits are cols 0..2)


def _round_up(x, m):
    return ((x + m - 1) // m) * m


def _vmem_bytes(tb, l_pad):
    """Rough per-grid-step VMEM footprint (bytes) for the chosen tile."""
    rows = tb * l_pad
    per_row = (2 * EMBED * 2                 # double-buffered bf16 activation block
               + 2 * EMBED * 2 + EMBED * 4   # lhs256 (bf16) + f32 roll temp
               + NBLK * FPAD * 4             # f32 MXU result y
               + 3 * FPAD * 4                # c3/c4/c5 staging
               + FPAD * 4)                   # time-index mask
    fixed = 2 * (2 * EMBED * NBLK * FPAD * 2     # conv weights (bf16)
                 + len(KS) * FPAD * 4            # biases
                 + len(KS) * FPAD * OUT_PAD * 4  # head weights (f32)
                 + OUT_PAD * 4                   # head bias
                 + tb * OUT_PAD * 4)             # output tile
    return rows * per_row + fixed


def dacnn_kernel(emb_ref, w_ref, b_ref, hw_ref, hb_ref, out_ref,
                 *, tb, l_pad, l_valid):
    rows = tb * l_pad

    # --- embedding tile + one-row time shift (XLU roll; routed via f32 so the
    #     sublane rotate is a 32-bit op on every TPU generation) ------------
    x = emb_ref[...]                                                # (rows,128) bf16
    x_next = pltpu.roll(x.astype(jnp.float32), rows - 1, axis=0)    # row r -> x[r+1]
    lhs = jnp.concatenate([x, x_next.astype(jnp.bfloat16)], axis=-1)  # (rows,256) bf16

    # --- all conv taps as ONE K=256 MXU matmul -----------------------------
    # TODO(synk): on v6e/v7x a bf16 `y` (bf16 shift/adds) would halve the VMEM
    # store/load traffic of this intermediate; kept f32 so the same code path
    # is numerically safe on v5e (no bf16 VALU).
    y = jnp.dot(lhs, w_ref[...], preferred_element_type=jnp.float32)  # (rows, 7*128)

    def blk(i):                       # lane-aligned 128-wide slice of y
        return y[:, i * FPAD:(i + 1) * FPAD]

    def sh(v, s):                     # v[r] <- v[r + s]   (time shift on XLU)
        return pltpu.roll(v, rows - s, axis=0)

    # conv_k[t] combined from pair-fused blocks (see prepare_kernel_params).
    c3 = blk(0) + sh(blk(1), 2)
    c4 = blk(2) + sh(blk(3), 2)
    c5 = blk(4) + sh(blk(5), 2) + sh(blk(6), 4)

    # --- masked global max over time, bias (post-max), ReLU ----------------
    t_idx = lax.broadcasted_iota(jnp.int32, (tb, l_pad, FPAD), 1)
    b_all = b_ref[...]                                              # (3,128) f32

    def pool(c_flat, k, ki):
        c = c_flat.reshape(tb, l_pad, FPAD)
        c = jnp.where(t_idx < (l_valid - k + 1), c, jnp.float32(-1e30))
        m = jnp.max(c, axis=1)                                      # (tb, 128)
        return jnp.maximum(m + b_all[ki:ki + 1, :], 0.0)

    feat = jnp.concatenate([pool(c3, 3, 0), pool(c4, 4, 1), pool(c5, 5, 2)],
                           axis=-1)                                 # (tb, 384) f32

    out = jnp.dot(feat, hw_ref[...],
                  preferred_element_type=jnp.float32) + hb_ref[...]
    out_ref[...] = out.astype(out_ref.dtype)                        # (tb, 128)


def prepare_kernel_params(params):
    """Pad / fuse PyTorch-layout params into kernel-ready tensors."""
    def pad_f(w):                                       # (k, E, 100) -> (k, E, 128)
        return jnp.pad(w, ((0, 0), (0, 0), (0, FPAD - NFILT)))

    w3, w4, w5 = pad_f(params['w3']), pad_f(params['w4']), pad_f(params['w5'])
    zero = jnp.zeros((EMBED, FPAD), jnp.float32)
    # K=256 tap-pair blocks contracting against lhs[t] = [x_t ; x_{t+1}].
    # Single leftover taps get a zero second half (also neutralizes the roll's
    # cross-batch wrap row, which only those blocks ever touch).
    blocks = [
        jnp.concatenate([w3[0], w3[1]], axis=0),   # k3 pair (0,1)      @ t
        jnp.concatenate([w3[2], zero], axis=0),    # k3 tap  2          @ t+2
        jnp.concatenate([w4[0], w4[1]], axis=0),   # k4 pair (0,1)      @ t
        jnp.concatenate([w4[2], w4[3]], axis=0),   # k4 pair (2,3)      @ t+2
        jnp.concatenate([w5[0], w5[1]], axis=0),   # k5 pair (0,1)      @ t
        jnp.concatenate([w5[2], w5[3]], axis=0),   # k5 pair (2,3)      @ t+2
        jnp.concatenate([w5[4], zero], axis=0),    # k5 tap  4          @ t+4
    ]
    w_all = jnp.concatenate(blocks, axis=1)                         # (256, 7*128)
    b_all = jnp.concatenate(
        [jnp.pad(params[b], ((0, 0), (0, FPAD - NFILT)))
         for b in ('b3', 'b4', 'b5')], axis=0)                      # (3, 128)

    # Fold fc (300->30) and fc2 (30->3): no activation/dropout in between.
    hi = jax.lax.Precision.HIGHEST
    w_fold = jnp.dot(params['fc_w'], params['fc2_w'], precision=hi)     # (300, 3)
    b_fold = jnp.dot(params['fc_b'], params['fc2_w'], precision=hi) + params['fc2_b']
    head_w = jnp.zeros((len(KS) * FPAD, OUT_PAD), jnp.float32)
    for ki in range(len(KS)):
        head_w = head_w.at[ki * FPAD:ki * FPAD + NFILT, :NCLASS].set(
            w_fold[ki * NFILT:(ki + 1) * NFILT, :])
    head_b = jnp.zeros((1, OUT_PAD), jnp.float32).at[0, :NCLASS].set(b_fold[0])

    return dict(w_all=w_all.astype(jnp.bfloat16),                   # MXU operand
                b_all=b_all.astype(jnp.float32),
                head_w=head_w, head_b=head_b)


def dacnn_forward(tokens, params):
    B, L = tokens.shape
    if L < max(KS):
        raise ValueError(f"sequence length {L} must be >= max conv size {max(KS)}")
    kp = prepare_kernel_params(params)

    # TODO(synk): fuse the embedding gather into the kernel (scalar-prefetch
    # tokens + per-row DMA from an HBM-resident table) to remove the (B,L,128)
    # HBM round-trip; gathering from a bf16 table at least halves its cost.
    emb = jnp.take(params['embedding'].astype(jnp.bfloat16), tokens, axis=0)

    l_pad = _round_up(L, 8)
    if l_pad != L:
        emb = jnp.pad(emb, ((0, 0), (0, l_pad - L), (0, 0)))

    # Generation-aware budgets: v5e/v6e have 128 MiB VMEM, v7x only 64 MiB.
    try:
        cap = int(getattr(pltpu.get_tpu_info(), 'vmem_capacity_bytes', 64 * 2**20))
    except Exception:  # pragma: no cover - conservative fallback
        cap = 64 * 2**20
    cap = max(cap, 48 * 2**20)
    big_vmem = cap >= 100 * 2**20
    row_budget = 4096 if big_vmem else 2048

    tb_cap = max(8, (row_budget // l_pad) // 8 * 8)
    tb = min(tb_cap, _round_up(B, 8))
    b_pad = _round_up(B, tb)
    # v7x: 2 TensorCores shard the "parallel" axis -> prefer >= 2 grid steps.
    if (not big_vmem) and b_pad // tb < 2 and b_pad >= 16:
        tb = max(8, (b_pad // 2) // 8 * 8)
        b_pad = _round_up(B, tb)
    if b_pad != B:
        emb = jnp.pad(emb, ((0, b_pad - B), (0, 0), (0, 0)))

    rows = tb * l_pad
    emb2 = emb.reshape(b_pad * l_pad, EMBED)                        # flattened rows

    est = _vmem_bytes(tb, l_pad)
    vmem_limit = int(min(64 * 2**20, cap - 16 * 2**20,
                         max(32 * 2**20, est * 3 // 2)))
    if est > vmem_limit:
        # TODO(synk): add a time-tiling grid axis ("arbitrary", last) with
        # per-k running-max accumulators to bound VMEM independent of L.
        raise NotImplementedError(
            f"per-step tile needs ~{est} B VMEM > budget {vmem_limit} B "
            f"(L={L}); time tiling not implemented")

    grid = (b_pad // tb,)
    total_rows = b_pad * l_pad
    flops = (2 * total_rows * (2 * EMBED) * (NBLK * FPAD)
             + 2 * b_pad * (len(KS) * FPAD) * OUT_PAD)
    bytes_accessed = (total_rows * EMBED * 2                        # bf16 activations
                      + 2 * EMBED * NBLK * FPAD * 2                 # bf16 conv weights
                      + len(KS) * FPAD * 4                          # biases
                      + len(KS) * FPAD * OUT_PAD * 4 + OUT_PAD * 4  # head
                      + b_pad * OUT_PAD * 4)                        # f32 output

    out = pl.pallas_call(
        functools.partial(dacnn_kernel, tb=tb, l_pad=l_pad, l_valid=L),
        out_shape=jax.ShapeDtypeStruct((b_pad, OUT_PAD), jnp.float32),
        grid=grid,
        in_specs=[
            pl.BlockSpec((rows, EMBED), lambda i: (i, 0)),               # activations
            pl.BlockSpec((2 * EMBED, NBLK * FPAD), lambda i: (0, 0)),    # resident
            pl.BlockSpec((len(KS), FPAD), lambda i: (0, 0)),             # resident
            pl.BlockSpec((len(KS) * FPAD, OUT_PAD), lambda i: (0, 0)),   # resident
            pl.BlockSpec((1, OUT_PAD), lambda i: (0, 0)),                # resident
        ],
        out_specs=pl.BlockSpec((tb, OUT_PAD), lambda i: (i, 0)),
        compiler_params=pltpu.CompilerParams(
            dimension_semantics=("parallel",),
            vmem_limit_bytes=vmem_limit),
        cost_estimate=pl.CostEstimate(flops=flops, transcendentals=0,
                                      bytes_accessed=bytes_accessed),
    )(emb2, kp['w_all'], kp['b_all'], kp['head_w'], kp['head_b'])

    return out[:B, :NCLASS]


def init_params(key, vocab_size):
    ks = jax.random.split(key, 11)

    def unif(k, shape, fan_in):
        bound = 1.0 / jnp.sqrt(fan_in)
        return jax.random.uniform(k, shape, jnp.float32, -bound, bound)

    return {
        'embedding': jax.random.normal(ks[0], (vocab_size + 2, EMBED), jnp.float32) * 0.1,
        # Conv1d weights stored as (k, E, F); biases as (1, F).
        'w3': unif(ks[1], (3, EMBED, NFILT), EMBED * 3),
        'b3': unif(ks[2], (1, NFILT), EMBED * 3),
        'w4': unif(ks[3], (4, EMBED, NFILT), EMBED * 4),
        'b4': unif(ks[4], (1, NFILT), EMBED * 4),
        'w5': unif(ks[5], (5, EMBED, NFILT), EMBED * 5),
        'b5': unif(ks[6], (1, NFILT), EMBED * 5),
        # Linear weights pre-transposed to (in, out); biases (1, out).
        'fc_w': unif(ks[7], (3 * NFILT, HIDDEN), 3 * NFILT),
        'fc_b': unif(ks[8], (1, HIDDEN), 3 * NFILT),
        'fc2_w': unif(ks[9], (HIDDEN, NCLASS), HIDDEN),
        'fc2_b': unif(ks[10], (1, NCLASS), HIDDEN),
    }


def dacnn_reference(tokens, params):
    """Pure-JAX reference on the ORIGINAL (unfused, unpadded) params.

    Embedding and conv weights are routed through bf16 to mirror the kernel's
    bf16 activation/weight stream (f32 accumulation); FC layers stay f32.
    """
    emb = jnp.take(params['embedding'], tokens, axis=0)
    emb = emb.astype(jnp.bfloat16).astype(jnp.float32)              # (B, L, E)
    x = jnp.transpose(emb, (0, 2, 1))                               # (B, E, L) NCW
    pooled = []
    for wname, bname in (('w3', 'b3'), ('w4', 'b4'), ('w5', 'b5')):
        w = params[wname].astype(jnp.bfloat16).astype(jnp.float32)  # (k, E, F)
        w_oik = jnp.transpose(w, (2, 1, 0))                         # (F, E, k)
        c = lax.conv_general_dilated(x, w_oik, (1,), 'VALID',
                                     dimension_numbers=('NCH', 'OIH', 'NCH'))
        c = c + params[bname][0][None, :, None]                     # (B, F, T)
        pooled.append(jnp.maximum(jnp.max(c, axis=2), 0.0))         # (B, F)
    feat = jnp.concatenate(pooled, axis=-1)                         # (B, 300)
    h = jnp.dot(feat, params['fc_w'],
                precision=jax.lax.Precision.HIGHEST) + params['fc_b']
    return jnp.dot(h, params['fc2_w'],
                   precision=jax.lax.Precision.HIGHEST) + params['fc2_b']


if __name__ == "__main__":
    key = jax.random.PRNGKey(0)
    k_par, k_tok = jax.random.split(key)

    V = 20          # small synthetic vocab (real V = len(word2idx))
    B, L = 2, 8     # batch=2, seq=8  (>= max kernel size 5)

    params = init_params(k_par, V)
    tokens = jax.random.randint(k_tok, (B, L), 0, V + 2, dtype=jnp.int32)

    out = jax.block_until_ready(dacnn_forward(tokens, params))
    ref = jax.block_until_ready(dacnn_reference(tokens, params))

    assert out.shape == (B, NCLASS)
    assert jnp.allclose(out, ref, rtol=2e-2, atol=3e-3), (out, ref)

    print("KERNEL_OK")
</pallas_src>

<mosaic_0001>
module attributes {stable_mosaic.version = 11 : i64} {
  func.func @dacnn_kernel(%arg0: i32, %arg1: memref<64x128xbf16, #tpu.memory_space<vmem>>, %arg2: memref<256x896xbf16, #tpu.memory_space<vmem>>, %arg3: memref<3x128xf32, #tpu.memory_space<vmem>>, %arg4: memref<384x128xf32, #tpu.memory_space<vmem>>, %arg5: memref<1x128xf32, #tpu.memory_space<vmem>>, %arg6: memref<8x128xf32, #tpu.memory_space<vmem>>) attributes {dimension_semantics = [#tpu.dimension_semantics<parallel>], iteration_bounds = array<i64: 1>, scalar_prefetch = 0 : i64, scratch_operands = 0 : i64, tpu.core_type = #tpu.core_type<tc>, window_params = [{transform_indices = @transform_0, window_bounds = array<i64: 64, 128>}, {pipeline_mode = #tpu.pipeline_mode<synchronous>, transform_indices = @transform_1, window_bounds = array<i64: 256, 896>}, {pipeline_mode = #tpu.pipeline_mode<synchronous>, transform_indices = @transform_2, window_bounds = array<i64: 3, 128>}, {pipeline_mode = #tpu.pipeline_mode<synchronous>, transform_indices = @transform_3, window_bounds = array<i64: 384, 128>}, {pipeline_mode = #tpu.pipeline_mode<synchronous>, transform_indices = @transform_4, window_bounds = array<i64: 1, 128>}, {transform_indices = @transform_5, window_bounds = array<i64: 8, 128>}]} {
    %c0 = arith.constant 0 : index
    %c0_0 = arith.constant 0 : index
    %0 = vector.load %arg1[%c0, %c0_0] : memref<64x128xbf16, #tpu.memory_space<vmem>>, vector<64x128xbf16>
    %1 = arith.extf %0 : vector<64x128xbf16> to vector<64x128xf32>
    %c63_i32 = arith.constant 63 : i32
    %2 = tpu.dynamic_rotate %1 by %c63_i32 dim 0 : vector<64x128xf32>, i32 -> vector<64x128xf32>
    %3 = arith.truncf %2 : vector<64x128xf32> to vector<64x128xbf16>
    %4 = tpu.concatenate %0, %3 in 1 : vector<64x128xbf16>, vector<64x128xbf16> -> vector<64x256xbf16>
    %c0_1 = arith.constant 0 : index
    %c0_2 = arith.constant 0 : index
    %5 = vector.load %arg2[%c0_1, %c0_2] : memref<256x896xbf16, #tpu.memory_space<vmem>>, vector<256x896xbf16>
    %cst = arith.constant dense<0.000000e+00> : vector<64x896xf32>
    %6 = tpu.matmul %4, %5, %cst {dimension_numbers = #tpu.dot_dimension_numbers<[1], [0], [0], [1], [0, 0, 1, 1], [], []>} : vector<64x256xbf16>, vector<256x896xbf16>, vector<64x896xf32> -> vector<64x896xf32>
    %7 = vector.extract_strided_slice %6 {offsets = [0, 0], sizes = [64, 128], strides = [1, 1]} : vector<64x896xf32> to vector<64x128xf32>
    %8 = vector.extract_strided_slice %6 {offsets = [0, 128], sizes = [64, 128], strides = [1, 1]} : vector<64x896xf32> to vector<64x128xf32>
    %c62_i32 = arith.constant 62 : i32
    %9 = tpu.dynamic_rotate %8 by %c62_i32 dim 0 : vector<64x128xf32>, i32 -> vector<64x128xf32>
    %10 = arith.addf %7, %9 : vector<64x128xf32>
    %11 = vector.extract_strided_slice %6 {offsets = [0, 256], sizes = [64, 128], strides = [1, 1]} : vector<64x896xf32> to vector<64x128xf32>
    %12 = vector.extract_strided_slice %6 {offsets = [0, 384], sizes = [64, 128], strides = [1, 1]} : vector<64x896xf32> to vector<64x128xf32>
    %c62_i32_3 = arith.constant 62 : i32
    %13 = tpu.dynamic_rotate %12 by %c62_i32_3 dim 0 : vector<64x128xf32>, i32 -> vector<64x128xf32>
    %14 = arith.addf %11, %13 : vector<64x128xf32>
    %15 = vector.extract_strided_slice %6 {offsets = [0, 512], sizes = [64, 128], strides = [1, 1]} : vector<64x896xf32> to vector<64x128xf32>
    %16 = vector.extract_strided_slice %6 {offsets = [0, 640], sizes = [64, 128], strides = [1, 1]} : vector<64x896xf32> to vector<64x128xf32>
    %c62_i32_4 = arith.constant 62 : i32
    %17 = tpu.dynamic_rotate %16 by %c62_i32_4 dim 0 : vector<64x128xf32>, i32 -> vector<64x128xf32>
    %18 = arith.addf %15, %17 : vector<64x128xf32>
    %19 = vector.extract_strided_slice %6 {offsets = [0, 768], sizes = [64, 128], strides = [1, 1]} : vector<64x896xf32> to vector<64x128xf32>
    %c60_i32 = arith.constant 60 : i32
    %20 = tpu.dynamic_rotate %19 by %c60_i32 dim 0 : vector<64x128xf32>, i32 -> vector<64x128xf32>
    %21 = arith.addf %18, %20 : vector<64x128xf32>
    %22 = tpu.iota {dimensions = array<i32: 1>} : vector<8x8x128xi32>
    %c0_5 = arith.constant 0 : index
    %c0_6 = arith.constant 0 : index
    %23 = vector.load %arg3[%c0_5, %c0_6] : memref<3x128xf32, #tpu.memory_space<vmem>>, vector<3x128xf32>
    %24 = vector.shape_cast %10 : vector<64x128xf32> to vector<8x8x128xf32>
    %c6_i32 = arith.constant 6 : i32
    %25 = vector.broadcast %c6_i32 : i32 to vector<8x8x128xi32>
    %26 = arith.cmpi slt, %22, %25 : vector<8x8x128xi32>
    %cst_7 = arith.constant -1.000000e+30 : f32
    %27 = vector.broadcast %cst_7 : f32 to vector<8x8x128xf32>
    %28 = arith.select %26, %24, %27 : vector<8x8x128xi1>, vector<8x8x128xf32>
    %cst_8 = arith.constant dense<0xFF800000> : vector<8x128xf32>
    %29 = vector.multi_reduction <maximumf>, %28, %cst_8 [1] : vector<8x8x128xf32> to vector<8x128xf32>
    %30 = vector.extract_strided_slice %23 {offsets = [0, 0], sizes = [1, 128], strides = [1, 1]} : vector<3x128xf32> to vector<1x128xf32>
    %31 = vector.broadcast %30 : vector<1x128xf32> to vector<8x128xf32>
    %32 = arith.addf %29, %31 : vector<8x128xf32>
    %cst_9 = arith.constant 0.000000e+00 : f32
    %33 = vector.broadcast %cst_9 : f32 to vector<8x128xf32>
    %34 = arith.maximumf %32, %33 : vector<8x128xf32>
    %35 = vector.shape_cast %14 : vector<64x128xf32> to vector<8x8x128xf32>
    %c5_i32 = arith.constant 5 : i32
    %36 = vector.broadcast %c5_i32 : i32 to vector<8x8x128xi32>
    %37 = arith.cmpi slt, %22, %36 : vector<8x8x128xi32>
    %cst_10 = arith.constant -1.000000e+30 : f32
    %38 = vector.broadcast %cst_10 : f32 to vector<8x8x128xf32>
    %39 = arith.select %37, %35, %38 : vector<8x8x128xi1>, vector<8x8x128xf32>
    %cst_11 = arith.constant dense<0xFF800000> : vector<8x128xf32>
    %40 = vector.multi_reduction <maximumf>, %39, %cst_11 [1] : vector<8x8x128xf32> to vector<8x128xf32>
    %41 = vector.extract_strided_slice %23 {offsets = [1, 0], sizes = [1, 128], strides = [1, 1]} : vector<3x128xf32> to vector<1x128xf32>
    %42 = vector.broadcast %41 : vector<1x128xf32> to vector<8x128xf32>
    %43 = arith.addf %40, %42 : vector<8x128xf32>
    %cst_12 = arith.constant 0.000000e+00 : f32
    %44 = vector.broadcast %cst_12 : f32 to vector<8x128xf32>
    %45 = arith.maximumf %43, %44 : vector<8x128xf32>
    %46 = vector.shape_cast %21 : vector<64x128xf32> to vector<8x8x128xf32>
    %c4_i32 = arith.constant 4 : i32
    %47 = vector.broadcast %c4_i32 : i32 to vector<8x8x128xi32>
    %48 = arith.cmpi slt, %22, %47 : vector<8x8x128xi32>
    %cst_13 = arith.constant -1.000000e+30 : f32
    %49 = vector.broadcast %cst_13 : f32 to vector<8x8x128xf32>
    %50 = arith.select %48, %46, %49 : vector<8x8x128xi1>, vector<8x8x128xf32>
    %cst_14 = arith.constant dense<0xFF800000> : vector<8x128xf32>
    %51 = vector.multi_reduction <maximumf>, %50, %cst_14 [1] : vector<8x8x128xf32> to vector<8x128xf32>
    %52 = vector.extract_strided_slice %23 {offsets = [2, 0], sizes = [1, 128], strides = [1, 1]} : vector<3x128xf32> to vector<1x128xf32>
    %53 = vector.broadcast %52 : vector<1x128xf32> to vector<8x128xf32>
    %54 = arith.addf %51, %53 : vector<8x128xf32>
    %cst_15 = arith.constant 0.000000e+00 : f32
    %55 = vector.broadcast %cst_15 : f32 to vector<8x128xf32>
    %56 = arith.maximumf %54, %55 : vector<8x128xf32>
    %57 = tpu.concatenate %34, %45, %56 in 1 : vector<8x128xf32>, vector<8x128xf32>, vector<8x128xf32> -> vector<8x384xf32>
    %c0_16 = arith.constant 0 : index
    %c0_17 = arith.constant 0 : index
    %58 = vector.load %arg4[%c0_16, %c0_17] : memref<384x128xf32, #tpu.memory_space<vmem>>, vector<384x128xf32>
    %cst_18 = arith.constant dense<0.000000e+00> : vector<8x128xf32>
    %59 = tpu.matmul %57, %58, %cst_18 {dimension_numbers = #tpu.dot_dimension_numbers<[1], [0], [0], [1], [0, 0, 1, 1], [], []>} : vector<8x384xf32>, vector<384x128xf32>, vector<8x128xf32> -> vector<8x128xf32>
    %c0_19 = arith.constant 0 : index
    %c0_20 = arith.constant 0 : index
    %60 = vector.load %arg5[%c0_19, %c0_20] : memref<1x128xf32, #tpu.memory_space<vmem>>, vector<1x128xf32>
    %61 = vector.broadcast %60 : vector<1x128xf32> to vector<8x128xf32>
    %62 = arith.addf %59, %61 : vector<8x128xf32>
    %c0_21 = arith.constant 0 : index
    %c0_22 = arith.constant 0 : index
    %63 = vector.load %arg6[%c0_21, %c0_22] : memref<8x128xf32, #tpu.memory_space<vmem>>, vector<8x128xf32>
    tpu.vector_store %arg6[%c0_21, %c0_22], %62 {strides = array<i32>} : memref<8x128xf32, #tpu.memory_space<vmem>>, vector<8x128xf32>,
    return
  }
  func.func @transform_0(%arg0: i32) -> (i32, i32) {
    %c0_i32 = arith.constant 0 : i32
    %c0_i32_0 = arith.constant 0 : i32
    return %arg0, %c0_i32 : i32, i32
  }
  func.func @transform_1(%arg0: i32) -> (i32, i32) {
    %c0_i32 = arith.constant 0 : i32
    %c0_i32_0 = arith.constant 0 : i32
    %c0_i32_1 = arith.constant 0 : i32
    return %c0_i32, %c0_i32_0 : i32, i32
  }
  func.func @transform_2(%arg0: i32) -> (i32, i32) {
    %c0_i32 = arith.constant 0 : i32
    %c0_i32_0 = arith.constant 0 : i32
    %c0_i32_1 = arith.constant 0 : i32
    return %c0_i32, %c0_i32_0 : i32, i32
  }
  func.func @transform_3(%arg0: i32) -> (i32, i32) {
    %c0_i32 = arith.constant 0 : i32
    %c0_i32_0 = arith.constant 0 : i32
    %c0_i32_1 = arith.constant 0 : i32
    return %c0_i32, %c0_i32_0 : i32, i32
  }
  func.func @transform_4(%arg0: i32) -> (i32, i32) {
    %c0_i32 = arith.constant 0 : i32
    %c0_i32_0 = arith.constant 0 : i32
    %c0_i32_1 = arith.constant 0 : i32
    return %c0_i32, %c0_i32_0 : i32, i32
  }
  func.func @transform_5(%arg0: i32) -> (i32, i32) {
    %c0_i32 = arith.constant 0 : i32
    %c0_i32_0 = arith.constant 0 : i32
    return %arg0, %c0_i32 : i32, i32
  }
}

</mosaic_0001>

<llo_original>
// kernel: tpu_custom_call.1
$region0: #{tpu_custom_call.1}
  #allocation0 [shape = 'u32[]', space=smem, size = 0x4, offset = 0x4, fixed_abs, tag = 'smem constant byte address 0x4 - core index']
  #allocation1 [shape = 'u32[72,128]{1,0:T(1,128)}', space=vmem, size = 0x9000, scoped, tag = 'internal scratch']
  %s0 = inlined_call_operand.hbm [shape: bf16[64,128], index: 0, kind: input, shape index: {}]
  %s1 = inlined_call_operand.hbm [shape: bf16[256,896], index: 1, kind: input, shape index: {}]
  %s2 = inlined_call_operand.hbm [shape: f32[3,128], index: 2, kind: input, shape index: {}]
  %s3 = inlined_call_operand.hbm [shape: f32[384,128], index: 3, kind: input, shape index: {}]
  %s4 = inlined_call_operand.vmem [shape: f32[1,128], index: 4, kind: input, shape index: {}]
  %s5 = inlined_call_operand.hbm [shape: f32[8,128], index: 5, kind: output, shape index: {}]
  %s6 = sld [smem:[#allocation0]]
  $region46: #{tpu_custom_call.1} parent=0
    _
  %s8 = ssub.s32 1, %s6
  %s9 = scalar_select 0, %s8, %s6
  $region1: #{tpu_custom_call.1} parent=0
    #allocation2 [shape = 'u8[16384]{0}', space=vmem, size = 0x4000, scoped, tag = 'input window, operand 0, single buffered']
    #allocation3 [shape = 's32[1]{0}', space=sflag, size = 0x4, scoped, tag = 'scoped memory for tpu_custom_call.1']
    #allocation4 [shape = 's32[1]{0}', space=sflag, size = 0x4, scoped, tag = 'scoped memory for tpu_custom_call.1']
    #allocation5 [shape = 'u8[458752]{0}', space=vmem, size = 0x70000, scoped, tag = 'input window, operand 1, single buffered']
    #allocation6 [shape = 's32[1]{0}', space=sflag, size = 0x4, scoped, tag = 'scoped memory for tpu_custom_call.1']
    #allocation7 [shape = 'u8[2048]{0}', space=vmem, size = 0x800, scoped, tag = 'input window, operand 2, single buffered']
    #allocation8 [shape = 'u8[196608]{0}', space=vmem, size = 0x30000, scoped, tag = 'input window, operand 3, single buffered']
    #allocation9 [shape = 's32[1]{0}', space=sflag, size = 0x4, scoped, tag = 'scoped memory for tpu_custom_call.1']
    #allocation10 [shape = 'u8[4096]{0}', space=vmem, size = 0x1000, scoped, tag = 'output window, operand 0, single buffered']
    %10 = vsyncpa [#allocation3], 0
    %11 = vsyncpa [#allocation6], 0
    %12 = vsyncpa [#allocation9], 0
    %13 = vsyncpa [#allocation4], 0
    // Predicated region
    $region2: #{tpu_custom_call.1} parent=1 // pred_check
      _
    $region3: #{tpu_custom_call.1} parent=1 // pred_check_branch
      %15 = sbr.rel (0) target = $region5
    $region4: #{tpu_custom_call.1} parent=1 // pred_region
      %17 = vsyncadd [#allocation3], 0
      %s18 = sshll.u32 %s0, 4
      %s19 = int_to_ptr.hbm [resolvable:$true] %s18
      %s20 = sshll.u32 [#allocation2], 4
      %s21 = int_to_ptr.vmem [resolvable:$true] %s20
      %26 = dma.hbm_to_vmem [thread:$0]  %s19, 512, %s21, [#allocation3], 64, 64, 4
    $region5: #{tpu_custom_call.1} parent=1 // pred_fallthru
      _
    // Predicated region
    $region6: #{tpu_custom_call.1} parent=1 // pred_check
      _
    $region7: #{tpu_custom_call.1} parent=1 // pred_check_branch
      %28 = sbr.rel (0) target = $region9
    $region8: #{tpu_custom_call.1} parent=1 // pred_region
      %30 = vsyncadd [#allocation6], 0
      %s31 = sshll.u32 %s1, 4
      %s32 = int_to_ptr.hbm [resolvable:$true] %s31
      %s33 = sshll.u32 [#allocation5], 4
      %s34 = int_to_ptr.vmem [resolvable:$true] %s33
      %39 = dma.hbm_to_vmem [thread:$0]  %s32, 14336, %s34, [#allocation6], 448, 448, 28
    $region9: #{tpu_custom_call.1} parent=1 // pred_fallthru
      _
    // Predicated region
    $region10: #{tpu_custom_call.1} parent=1 // pred_check
      _
    $region11: #{tpu_custom_call.1} parent=1 // pred_check_branch
      %41 = sbr.rel (0) target = $region13
    $region12: #{tpu_custom_call.1} parent=1 // pred_region
      %43 = vsyncadd [#allocation6], 0
      %s45 = sshll.u32 %s2, 4
      %s46 = int_to_ptr.hbm [resolvable:$true] %s45
      %s47 = sshll.u32 [#allocation7], 4
      %s48 = int_to_ptr.vmem [resolvable:$true] %s47
      %50 = dma.hbm_to_vmem [thread:$0]  %s46, 64, %s48, [#allocation6]
    $region13: #{tpu_custom_call.1} parent=1 // pred_fallthru
      _
    // Predicated region
    $region14: #{tpu_custom_call.1} parent=1 // pred_check
      _
    $region15: #{tpu_custom_call.1} parent=1 // pred_check_branch
      %52 = sbr.rel (0) target = $region17
    $region16: #{tpu_custom_call.1} parent=1 // pred_region
      %54 = vsyncadd [#allocation9], 0
      %s55 = sshll.u32 %s3, 4
      %s56 = int_to_ptr.hbm [resolvable:$true] %s55
      %s57 = sshll.u32 [#allocation8], 4
      %s58 = int_to_ptr.vmem [resolvable:$true] %s57
      %63 = dma.hbm_to_vmem [thread:$0]  %s56, 6144, %s58, [#allocation9], 128, 128, 8
    $region17: #{tpu_custom_call.1} parent=1 // pred_fallthru
      _
    // Predicated region
    $region18: #{tpu_custom_call.1} parent=1 // pred_check
      _
    $region19: #{tpu_custom_call.1} parent=1 // pred_check_branch
      %65 = sbr.rel (0) target = $region21
    $region20: #{tpu_custom_call.1} parent=1 // pred_region
      _
    $region21: #{tpu_custom_call.1} parent=1 // pred_fallthru
      _
    // Predicated region
    $region22: #{tpu_custom_call.1} parent=1 // pred_check
      _
    $region23: #{tpu_custom_call.1} parent=1 // pred_check_branch
      %67 = sbr.rel (0) target = $region25
    $region24: #{tpu_custom_call.1} parent=1 // pred_region
      %69 = dma.done [#allocation3], 512
    $region25: #{tpu_custom_call.1} parent=1 // pred_fallthru
      _
    // Predicated region
    $region26: #{tpu_custom_call.1} parent=1 // pred_check
      _
    $region27: #{tpu_custom_call.1} parent=1 // pred_check_branch
      %71 = sbr.rel (0) target = $region29
    $region28: #{tpu_custom_call.1} parent=1 // pred_region
      %73 = dma.done [#allocation6], 14336
    $region29: #{tpu_custom_call.1} parent=1 // pred_fallthru
      _
    // Predicated region
    $region30: #{tpu_custom_call.1} parent=1 // pred_check
      _
    $region31: #{tpu_custom_call.1} parent=1 // pred_check_branch
      %75 = sbr.rel (0) target = $region33
    $region32: #{tpu_custom_call.1} parent=1 // pred_region
      %77 = dma.done [#allocation6], 64
    $region33: #{tpu_custom_call.1} parent=1 // pred_fallthru
      _
    // Predicated region
    $region34: #{tpu_custom_call.1} parent=1 // pred_check
      _
    $region35: #{tpu_custom_call.1} parent=1 // pred_check_branch
      %79 = sbr.rel (0) target = $region37
    $region36: #{tpu_custom_call.1} parent=1 // pred_region
      %81 = dma.done [#allocation9], 6144
    $region37: #{tpu_custom_call.1} parent=1 // pred_fallthru
      _
    %v82 = vld [vmem:[#allocation2] sm:$0xf]
    %v83 = vld [vmem:[#allocation2 + $0x4] sm:$0xf]
    %v84 = vld [vmem:[#allocation2 + $0x8] sm:$0xf]
    %v85 = vld [vmem:[#allocation2 + $0xc] sm:$0xf]
    %v86 = vld [vmem:[#allocation2 + $0x10] sm:$0xf]
    %v87 = vld [vmem:[#allocation2 + $0x14] sm:$0xf]
    %v88 = vld [vmem:[#allocation2 + $0x18] sm:$0xf]
    %v89 = vld [vmem:[#allocation2 + $0x1c] sm:$0xf]
    %v90 = vunpack.c.l.bf16 %v82
    %v91 = vunpack.c.l.bf16 %v83
    %v92 = vunpack.c.l.bf16 %v84
    %v93 = vunpack.c.l.bf16 %v85
    %v94 = vunpack.c.l.bf16 %v86
    %v95 = vunpack.c.l.bf16 %v87
    %v96 = vunpack.c.l.bf16 %v88
    %v97 = vunpack.c.l.bf16 %v89
    %v98 = vrot.slane %v90, 1
    %v99 = vrot.slane %v91, 1
    %v100 = vrot.slane %v92, 1
    %v101 = vrot.slane %v93, 1
    %v102 = vrot.slane %v94, 1
    %v103 = vrot.slane %v95, 1
    %v104 = vrot.slane %v96, 1
    %v105 = vrot.slane %v97, 1
    %v106 = vlaneseq
    %v107 = vshrl.u32 %v106, 7
    %vm108 = vcmp.lt.s32.totalorder %v107, 7
    %v109 = vsel %vm108, %v104, %v105
    %v110 = vsel %vm108, %v103, %v104
    %v111 = vsel %vm108, %v102, %v103
    %v112 = vsel %vm108, %v101, %v102
    %v113 = vsel %vm108, %v100, %v101
    %v114 = vsel %vm108, %v99, %v100
    %v115 = vsel %vm108, %v98, %v99
    %v116 = vsel %vm108, %v105, %v98
    %v117 = vpack.c.bf16 %v115, %v115
    %v118 = vpack.c.bf16 %v114, %v114
    %v119 = vpack.c.bf16 %v113, %v113
    %v120 = vpack.c.bf16 %v112, %v112
    %v121 = vpack.c.bf16 %v111, %v111
    %v122 = vpack.c.bf16 %v110, %v110
    %v123 = vpack.c.bf16 %v109, %v109
    %v124 = vpack.c.bf16 %v116, %v116
    %v133 = vunpack.c.l.b16 %v82
    %v134 = vunpack.c.l.b16 %v83
    %v135 = vunpack.c.l.b16 %v84
    %v136 = vunpack.c.l.b16 %v85
    %v137 = vunpack.c.l.b16 %v86
    %v138 = vunpack.c.l.b16 %v87
    %v139 = vunpack.c.l.b16 %v88
    %v140 = vunpack.c.l.b16 %v89
    %v141 = vpack.c.b16 %v134, %v133
    %v142 = vpack.c.b16 %v136, %v135
    %v143 = vpack.c.b16 %v138, %v137
    %v144 = vpack.c.b16 %v140, %v139
    %v157 = vunpack.c.l.b16 %v117
    %v158 = vunpack.c.l.b16 %v118
    %v159 = vunpack.c.l.b16 %v119
    %v160 = vunpack.c.l.b16 %v120
    %v161 = vunpack.c.l.b16 %v121
    %v162 = vunpack.c.l.b16 %v122
    %v163 = vunpack.c.l.b16 %v123
    %v164 = vunpack.c.l.b16 %v124
    %v165 = vpack.c.b16 %v158, %v157
    %v166 = vpack.c.b16 %v160, %v159
    %v167 = vpack.c.b16 %v162, %v161
    %v168 = vpack.c.b16 %v164, %v163
    %v173 = vld [vmem:[#allocation5] sm:$0xff]
    %v174 = vld [vmem:[#allocation5 + $0x8] sm:$0xff]
    %v175 = vld [vmem:[#allocation5 + $0x10] sm:$0xff]
    %v176 = vld [vmem:[#allocation5 + $0x18] sm:$0xf]
    %v177 = vld [vmem:[#allocation5 + $0x1c] sm:$0xff]
    %v178 = vld [vmem:[#allocation5 + $0x24] sm:$0xff]
    %v179 = vld [vmem:[#allocation5 + $0x2c] sm:$0xff]
    %v180 = vld [vmem:[#allocation5 + $0x34] sm:$0xf]
    %v181 = vld [vmem:[#allocation5 + $0x38] sm:$0xff]
    %v182 = vld [vmem:[#allocation5 + $0x40] sm:$0xff]
    %v183 = vld [vmem:[#allocation5 + $0x48] sm:$0xff]
    %v184 = vld [vmem:[#allocation5 + $0x50] sm:$0xf]
    %v185 = vld [vmem:[#allocation5 + $0x54] sm:$0xff]
    %v186 = vld [vmem:[#allocation5 + $0x5c] sm:$0xff]
    %v187 = vld [vmem:[#allocation5 + $0x64] sm:$0xff]
    %v188 = vld [vmem:[#allocation5 + $0x6c] sm:$0xf]
    %v189 = vld [vmem:[#allocation5 + $0x70] sm:$0xff]
    %v190 = vld [vmem:[#allocation5 + $0x78] sm:$0xff]
    %v191 = vld [vmem:[#allocation5 + $0x80] sm:$0xff]
    %v192 = vld [vmem:[#allocation5 + $0x88] sm:$0xf]
    %v193 = vld [vmem:[#allocation5 + $0x8c] sm:$0xff]
    %v194 = vld [vmem:[#allocation5 + $0x94] sm:$0xff]
    %v195 = vld [vmem:[#allocation5 + $0x9c] sm:$0xff]
    %v196 = vld [vmem:[#allocation5 + $0xa4] sm:$0xf]
    %v197 = vld [vmem:[#allocation5 + $0xa8] sm:$0xff]
    %v198 = vld [vmem:[#allocation5 + $0xb0] sm:$0xff]
    %v199 = vld [vmem:[#allocation5 + $0xb8] sm:$0xff]
    %v200 = vld [vmem:[#allocation5 + $0xc0] sm:$0xf]
    %v201 = vld [vmem:[#allocation5 + $0xc4] sm:$0xff]
    %v202 = vld [vmem:[#allocation5 + $0xcc] sm:$0xff]
    %v203 = vld [vmem:[#allocation5 + $0xd4] sm:$0xff]
    %v204 = vld [vmem:[#allocation5 + $0xdc] sm:$0xf]
    %v205 = vld [vmem:[#allocation5 + $0xe0] sm:$0xff]
    %v206 = vld [vmem:[#allocation5 + $0xe8] sm:$0xff]
    %v207 = vld [vmem:[#allocation5 + $0xf0] sm:$0xff]
    %v208 = vld [vmem:[#allocation5 + $0xf8] sm:$0xf]
    %v209 = vld [vmem:[#allocation5 + $0xfc] sm:$0xff]
    %v210 = vld [vmem:[#allocation5 + $0x104] sm:$0xff]
    %v211 = vld [vmem:[#allocation5 + $0x10c] sm:$0xff]
    %v212 = vld [vmem:[#allocation5 + $0x114] sm:$0xf]
    %v213 = vld [vmem:[#allocation5 + $0x118] sm:$0xff]
    %v214 = vld [vmem:[#allocation5 + $0x120] sm:$0xff]
    %v215 = vld [vmem:[#allocation5 + $0x128] sm:$0xff]
    %v216 = vld [vmem:[#allocation5 + $0x130] sm:$0xf]
    %v217 = vld [vmem:[#allocation5 + $0x134] sm:$0xff]
    %v218 = vld [vmem:[#allocation5 + $0x13c] sm:$0xff]
    %v219 = vld [vmem:[#allocation5 + $0x144] sm:$0xff]
    %v220 = vld [vmem:[#allocation5 + $0x14c] sm:$0xf]
    %v221 = vld [vmem:[#allocation5 + $0x150] sm:$0xff]
    %v222 = vld [vmem:[#allocation5 + $0x158] sm:$0xff]
    %v223 = vld [vmem:[#allocation5 + $0x160] sm:$0xff]
    %v224 = vld [vmem:[#allocation5 + $0x168] sm:$0xf]
    %v225 = vld [vmem:[#allocation5 + $0x16c] sm:$0xff]
    %v226 = vld [vmem:[#allocation5 + $0x174] sm:$0xff]
    %v227 = vld [vmem:[#allocation5 + $0x17c] sm:$0xff]
    %v228 = vld [vmem:[#allocation5 + $0x184] sm:$0xf]
    %v229 = vld [vmem:[#allocation5 + $0x188] sm:$0xff]
    %v230 = vld [vmem:[#allocation5 + $0x190] sm:$0xff]
    %v231 = vld [vmem:[#allocation5 + $0x198] sm:$0xff]
    %v232 = vld [vmem:[#allocation5 + $0x1a0] sm:$0xf]
    %v233 = vld [vmem:[#allocation5 + $0x1a4] sm:$0xff]
    %v234 = vld [vmem:[#allocation5 + $0x1ac] sm:$0xff]
    %v235 = vld [vmem:[#allocation5 + $0x1b4] sm:$0xff]
    %v236 = vld [vmem:[#allocation5 + $0x1bc] sm:$0xf]
    %v237 = vld [vmem:[#allocation5 + $0x1c0] sm:$0xff]
    %v238 = vld [vmem:[#allocation5 + $0x1c8] sm:$0xff]
    %v239 = vld [vmem:[#allocation5 + $0x1d0] sm:$0xff]
    %v240 = vld [vmem:[#allocation5 + $0x1d8] sm:$0xf]
    %v241 = vld [vmem:[#allocation5 + $0x1dc] sm:$0xff]
    %v242 = vld [vmem:[#allocation5 + $0x1e4] sm:$0xff]
    %v243 = vld [vmem:[#allocation5 + $0x1ec] sm:$0xff]
    %v244 = vld [vmem:[#allocation5 + $0x1f4] sm:$0xf]
    %v245 = vld [vmem:[#allocation5 + $0x1f8] sm:$0xff]
    %v246 = vld [vmem:[#allocation5 + $0x200] sm:$0xff]
    %v247 = vld [vmem:[#allocation5 + $0x208] sm:$0xff]
    %v248 = vld [vmem:[#allocation5 + $0x210] sm:$0xf]
    %v249 = vld [vmem:[#allocation5 + $0x214] sm:$0xff]
    %v250 = vld [vmem:[#allocation5 + $0x21c] sm:$0xff]
    %v251 = vld [vmem:[#allocation5 + $0x224] sm:$0xff]
    %v252 = vld [vmem:[#allocation5 + $0x22c] sm:$0xf]
    %v253 = vld [vmem:[#allocation5 + $0x230] sm:$0xff]
    %v254 = vld [vmem:[#allocation5 + $0x238] sm:$0xff]
    %v255 = vld [vmem:[#allocation5 + $0x240] sm:$0xff]
    %v256 = vld [vmem:[#allocation5 + $0x248] sm:$0xf]
    %v257 = vld [vmem:[#allocation5 + $0x24c] sm:$0xff]
    %v258 = vld [vmem:[#allocation5 + $0x254] sm:$0xff]
    %v259 = vld [vmem:[#allocation5 + $0x25c] sm:$0xff]
    %v260 = vld [vmem:[#allocation5 + $0x264] sm:$0xf]
    %v261 = vld [vmem:[#allocation5 + $0x268] sm:$0xff]
    %v262 = vld [vmem:[#allocation5 + $0x270] sm:$0xff]
    %v263 = vld [vmem:[#allocation5 + $0x278] sm:$0xff]
    %v264 = vld [vmem:[#allocation5 + $0x280] sm:$0xf]
    %v265 = vld [vmem:[#allocation5 + $0x284] sm:$0xff]
    %v266 = vld [vmem:[#allocation5 + $0x28c] sm:$0xff]
    %v267 = vld [vmem:[#allocation5 + $0x294] sm:$0xff]
    %v268 = vld [vmem:[#allocation5 + $0x29c] sm:$0xf]
    %v269 = vld [vmem:[#allocation5 + $0x2a0] sm:$0xff]
    %v270 = vld [vmem:[#allocation5 + $0x2a8] sm:$0xff]
    %v271 = vld [vmem:[#allocation5 + $0x2b0] sm:$0xff]
    %v272 = vld [vmem:[#allocation5 + $0x2b8] sm:$0xf]
    %v273 = vld [vmem:[#allocation5 + $0x2bc] sm:$0xff]
    %v274 = vld [vmem:[#allocation5 + $0x2c4] sm:$0xff]
    %v275 = vld [vmem:[#allocation5 + $0x2cc] sm:$0xff]
    %v276 = vld [vmem:[#allocation5 + $0x2d4] sm:$0xf]
    %v277 = vld [vmem:[#allocation5 + $0x2d8] sm:$0xff]
    %v278 = vld [vmem:[#allocation5 + $0x2e0] sm:$0xff]
    %v279 = vld [vmem:[#allocation5 + $0x2e8] sm:$0xff]
    %v280 = vld [vmem:[#allocation5 + $0x2f0] sm:$0xf]
    %v281 = vld [vmem:[#allocation5 + $0x2f4] sm:$0xff]
    %v282 = vld [vmem:[#allocation5 + $0x2fc] sm:$0xff]
    %v283 = vld [vmem:[#allocation5 + $0x304] sm:$0xff]
    %v284 = vld [vmem:[#allocation5 + $0x30c] sm:$0xf]
    %v285 = vld [vmem:[#allocation5 + $0x310] sm:$0xff]
    %v286 = vld [vmem:[#allocation5 + $0x318] sm:$0xff]
    %v287 = vld [vmem:[#allocation5 + $0x320] sm:$0xff]
    %v288 = vld [vmem:[#allocation5 + $0x328] sm:$0xf]
    %v289 = vld [vmem:[#allocation5 + $0x32c] sm:$0xff]
    %v290 = vld [vmem:[#allocation5 + $0x334] sm:$0xff]
    %v291 = vld [vmem:[#allocation5 + $0x33c] sm:$0xff]
    %v292 = vld [vmem:[#allocation5 + $0x344] sm:$0xf]
    %v293 = vld [vmem:[#allocation5 + $0x348] sm:$0xff]
    %v294 = vld [vmem:[#allocation5 + $0x350] sm:$0xff]
    %v295 = vld [vmem:[#allocation5 + $0x358] sm:$0xff]
    %v296 = vld [vmem:[#allocation5 + $0x360] sm:$0xf]
    %v297 = vld [vmem:[#allocation5 + $0x364] sm:$0xff]
    %v298 = vld [vmem:[#allocation5 + $0x36c] sm:$0xff]
    %v299 = vld [vmem:[#allocation5 + $0x374] sm:$0xff]
    %v300 = vld [vmem:[#allocation5 + $0x37c] sm:$0xf]
    %v429 = vunpack.c.l.b16 %v173
    %v430 = vunpack.c.h.b16 %v173
    %v431 = vunpack.c.l.b16 %v174
    %v432 = vunpack.c.h.b16 %v174
    %v433 = vunpack.c.l.b16 %v175
    %v434 = vunpack.c.h.b16 %v175
    %v435 = vunpack.c.l.b16 %v176
    %v436 = vunpack.c.l.b16 %v177
    %v437 = vunpack.c.h.b16 %v177
    %v438 = vunpack.c.l.b16 %v178
    %v439 = vunpack.c.h.b16 %v178
    %v440 = vunpack.c.l.b16 %v179
    %v441 = vunpack.c.h.b16 %v179
    %v442 = vunpack.c.l.b16 %v180
    %v443 = vunpack.c.l.b16 %v181
    %v444 = vunpack.c.h.b16 %v181
    %v445 = vunpack.c.l.b16 %v182
    %v446 = vunpack.c.h.b16 %v182
    %v447 = vunpack.c.l.b16 %v183
    %v448 = vunpack.c.h.b16 %v183
    %v449 = vunpack.c.l.b16 %v184
    %v450 = vunpack.c.l.b16 %v185
    %v451 = vunpack.c.h.b16 %v185
    %v452 = vunpack.c.l.b16 %v186
    %v453 = vunpack.c.h.b16 %v186
    %v454 = vunpack.c.l.b16 %v187
    %v455 = vunpack.c.h.b16 %v187
    %v456 = vunpack.c.l.b16 %v188
    %v457 = vunpack.c.l.b16 %v189
    %v458 = vunpack.c.h.b16 %v189
    %v459 = vunpack.c.l.b16 %v190
    %v460 = vunpack.c.h.b16 %v190
    %v461 = vunpack.c.l.b16 %v191
    %v462 = vunpack.c.h.b16 %v191
    %v463 = vunpack.c.l.b16 %v192
    %v464 = vunpack.c.l.b16 %v193
    %v465 = vunpack.c.h.b16 %v193
    %v466 = vunpack.c.l.b16 %v194
    %v467 = vunpack.c.h.b16 %v194
    %v468 = vunpack.c.l.b16 %v195
    %v469 = vunpack.c.h.b16 %v195
    %v470 = vunpack.c.l.b16 %v196
    %v471 = vunpack.c.l.b16 %v197
    %v472 = vunpack.c.h.b16 %v197
    %v473 = vunpack.c.l.b16 %v198
    %v474 = vunpack.c.h.b16 %v198
    %v475 = vunpack.c.l.b16 %v199
    %v476 = vunpack.c.h.b16 %v199
    %v477 = vunpack.c.l.b16 %v200
    %v478 = vunpack.c.l.b16 %v201
    %v479 = vunpack.c.h.b16 %v201
    %v480 = vunpack.c.l.b16 %v202
    %v481 = vunpack.c.h.b16 %v202
    %v482 = vunpack.c.l.b16 %v203
    %v483 = vunpack.c.h.b16 %v203
    %v484 = vunpack.c.l.b16 %v204
    %v485 = vunpack.c.l.b16 %v205
    %v486 = vunpack.c.h.b16 %v205
    %v487 = vunpack.c.l.b16 %v206
    %v488 = vunpack.c.h.b16 %v206
    %v489 = vunpack.c.l.b16 %v207
    %v490 = vunpack.c.h.b16 %v207
    %v491 = vunpack.c.l.b16 %v208
    %v492 = vunpack.c.l.b16 %v209
    %v493 = vunpack.c.h.b16 %v209
    %v494 = vunpack.c.l.b16 %v210
    %v495 = vunpack.c.h.b16 %v210
    %v496 = vunpack.c.l.b16 %v211
    %v497 = vunpack.c.h.b16 %v211
    %v498 = vunpack.c.l.b16 %v212
    %v499 = vunpack.c.l.b16 %v213
    %v500 = vunpack.c.h.b16 %v213
    %v501 = vunpack.c.l.b16 %v214
    %v502 = vunpack.c.h.b16 %v214
    %v503 = vunpack.c.l.b16 %v215
    %v504 = vunpack.c.h.b16 %v215
    %v505 = vunpack.c.l.b16 %v216
    %v506 = vunpack.c.l.b16 %v217
    %v507 = vunpack.c.h.b16 %v217
    %v508 = vunpack.c.l.b16 %v218
    %v509 = vunpack.c.h.b16 %v218
    %v510 = vunpack.c.l.b16 %v219
    %v511 = vunpack.c.h.b16 %v219
    %v512 = vunpack.c.l.b16 %v220
    %v513 = vunpack.c.l.b16 %v221
    %v514 = vunpack.c.h.b16 %v221
    %v515 = vunpack.c.l.b16 %v222
    %v516 = vunpack.c.h.b16 %v222
    %v517 = vunpack.c.l.b16 %v223
    %v518 = vunpack.c.h.b16 %v223
    %v519 = vunpack.c.l.b16 %v224
    %v520 = vunpack.c.l.b16 %v225
    %v521 = vunpack.c.h.b16 %v225
    %v522 = vunpack.c.l.b16 %v226
    %v523 = vunpack.c.h.b16 %v226
    %v524 = vunpack.c.l.b16 %v227
    %v525 = vunpack.c.h.b16 %v227
    %v526 = vunpack.c.l.b16 %v228
    %v527 = vunpack.c.l.b16 %v229
    %v528 = vunpack.c.h.b16 %v229
    %v529 = vunpack.c.l.b16 %v230
    %v530 = vunpack.c.h.b16 %v230
    %v531 = vunpack.c.l.b16 %v231
    %v532 = vunpack.c.h.b16 %v231
    %v533 = vunpack.c.l.b16 %v232
    %v534 = vunpack.c.l.b16 %v233
    %v535 = vunpack.c.h.b16 %v233
    %v536 = vunpack.c.l.b16 %v234
    %v537 = vunpack.c.h.b16 %v234
    %v538 = vunpack.c.l.b16 %v235
    %v539 = vunpack.c.h.b16 %v235
    %v540 = vunpack.c.l.b16 %v236
    %v541 = vunpack.c.l.b16 %v237
    %v542 = vunpack.c.h.b16 %v237
    %v543 = vunpack.c.l.b16 %v238
    %v544 = vunpack.c.h.b16 %v238
    %v545 = vunpack.c.l.b16 %v239
    %v546 = vunpack.c.h.b16 %v239
    %v547 = vunpack.c.l.b16 %v240
    %v548 = vunpack.c.l.b16 %v241
    %v549 = vunpack.c.h.b16 %v241
    %v550 = vunpack.c.l.b16 %v242
    %v551 = vunpack.c.h.b16 %v242
    %v552 = vunpack.c.l.b16 %v243
    %v553 = vunpack.c.h.b16 %v243
    %v554 = vunpack.c.l.b16 %v244
    %v555 = vunpack.c.l.b16 %v245
    %v556 = vunpack.c.h.b16 %v245
    %v557 = vunpack.c.l.b16 %v246
    %v558 = vunpack.c.h.b16 %v246
    %v559 = vunpack.c.l.b16 %v247
    %v560 = vunpack.c.h.b16 %v247
    %v561 = vunpack.c.l.b16 %v248
    %v562 = vunpack.c.l.b16 %v249
    %v563 = vunpack.c.h.b16 %v249
    %v564 = vunpack.c.l.b16 %v250
    %v565 = vunpack.c.h.b16 %v250
    %v566 = vunpack.c.l.b16 %v251
    %v567 = vunpack.c.h.b16 %v251
    %v568 = vunpack.c.l.b16 %v252
    %v569 = vunpack.c.l.b16 %v253
    %v570 = vunpack.c.h.b16 %v253
    %v571 = vunpack.c.l.b16 %v254
    %v572 = vunpack.c.h.b16 %v254
    %v573 = vunpack.c.l.b16 %v255
    %v574 = vunpack.c.h.b16 %v255
    %v575 = vunpack.c.l.b16 %v256
    %v576 = vunpack.c.l.b16 %v257
    %v577 = vunpack.c.h.b16 %v257
    %v578 = vunpack.c.l.b16 %v258
    %v579 = vunpack.c.h.b16 %v258
    %v580 = vunpack.c.l.b16 %v259
    %v581 = vunpack.c.h.b16 %v259
    %v582 = vunpack.c.l.b16 %v260
    %v583 = vunpack.c.l.b16 %v261
    %v584 = vunpack.c.h.b16 %v261
    %v585 = vunpack.c.l.b16 %v262
    %v586 = vunpack.c.h.b16 %v262
    %v587 = vunpack.c.l.b16 %v263
    %v588 = vunpack.c.h.b16 %v263
    %v589 = vunpack.c.l.b16 %v264
    %v590 = vunpack.c.l.b16 %v265
    %v591 = vunpack.c.h.b16 %v265
    %v592 = vunpack.c.l.b16 %v266
    %v593 = vunpack.c.h.b16 %v266
    %v594 = vunpack.c.l.b16 %v267
    %v595 = vunpack.c.h.b16 %v267
    %v596 = vunpack.c.l.b16 %v268
    %v597 = vunpack.c.l.b16 %v269
    %v598 = vunpack.c.h.b16 %v269
    %v599 = vunpack.c.l.b16 %v270
    %v600 = vunpack.c.h.b16 %v270
    %v601 = vunpack.c.l.b16 %v271
    %v602 = vunpack.c.h.b16 %v271
    %v603 = vunpack.c.l.b16 %v272
    %v604 = vunpack.c.l.b16 %v273
    %v605 = vunpack.c.h.b16 %v273
    %v606 = vunpack.c.l.b16 %v274
    %v607 = vunpack.c.h.b16 %v274
    %v608 = vunpack.c.l.b16 %v275
    %v609 = vunpack.c.h.b16 %v275
    %v610 = vunpack.c.l.b16 %v276
    %v611 = vunpack.c.l.b16 %v277
    %v612 = vunpack.c.h.b16 %v277
    %v613 = vunpack.c.l.b16 %v278
    %v614 = vunpack.c.h.b16 %v278
    %v615 = vunpack.c.l.b16 %v279
    %v616 = vunpack.c.h.b16 %v279
    %v617 = vunpack.c.l.b16 %v280
    %v618 = vunpack.c.l.b16 %v281
    %v619 = vunpack.c.h.b16 %v281
    %v620 = vunpack.c.l.b16 %v282
    %v621 = vunpack.c.h.b16 %v282
    %v622 = vunpack.c.l.b16 %v283
    %v623 = vunpack.c.h.b16 %v283
    %v624 = vunpack.c.l.b16 %v284
    %v625 = vunpack.c.l.b16 %v285
    %v626 = vunpack.c.h.b16 %v285
    %v627 = vunpack.c.l.b16 %v286
    %v628 = vunpack.c.h.b16 %v286
    %v629 = vunpack.c.l.b16 %v287
    %v630 = vunpack.c.h.b16 %v287
    %v631 = vunpack.c.l.b16 %v288
    %v632 = vunpack.c.l.b16 %v289
    %v633 = vunpack.c.h.b16 %v289
    %v634 = vunpack.c.l.b16 %v290
    %v635 = vunpack.c.h.b16 %v290
    %v636 = vunpack.c.l.b16 %v291
    %v637 = vunpack.c.h.b16 %v291
    %v638 = vunpack.c.l.b16 %v292
    %v639 = vunpack.c.l.b16 %v293
    %v640 = vunpack.c.h.b16 %v293
    %v641 = vunpack.c.l.b16 %v294
    %v642 = vunpack.c.h.b16 %v294
    %v643 = vunpack.c.l.b16 %v295
    %v644 = vunpack.c.h.b16 %v295
    %v645 = vunpack.c.l.b16 %v296
    %v646 = vunpack.c.l.b16 %v297
    %v647 = vunpack.c.h.b16 %v297
    %v648 = vunpack.c.l.b16 %v298
    %v649 = vunpack.c.h.b16 %v298
    %v650 = vunpack.c.l.b16 %v299
    %v651 = vunpack.c.h.b16 %v299
    %v652 = vunpack.c.l.b16 %v300
    %v653 = vpack.c.b16 %v436, %v429
    %v654 = vpack.c.b16 %v437, %v430
    %v655 = vpack.c.b16 %v438, %v431
    %v656 = vpack.c.b16 %v439, %v432
    %v657 = vpack.c.b16 %v440, %v433
    %v658 = vpack.c.b16 %v441, %v434
    %v659 = vpack.c.b16 %v442, %v435
    %v660 = vpack.c.b16 %v450, %v443
    %v661 = vpack.c.b16 %v451, %v444
    %v662 = vpack.c.b16 %v452, %v445
    %v663 = vpack.c.b16 %v453, %v446
    %v664 = vpack.c.b16 %v454, %v447
    %v665 = vpack.c.b16 %v455, %v448
    %v666 = vpack.c.b16 %v456, %v449
    %v667 = vpack.c.b16 %v464, %v457
    %v668 = vpack.c.b16 %v465, %v458
    %v669 = vpack.c.b16 %v466, %v459
    %v670 = vpack.c.b16 %v467, %v460
    %v671 = vpack.c.b16 %v468, %v461
    %v672 = vpack.c.b16 %v469, %v462
    %v673 = vpack.c.b16 %v470, %v463
    %v674 = vpack.c.b16 %v478, %v471
    %v675 = vpack.c.b16 %v479, %v472
    %v676 = vpack.c.b16 %v480, %v473
    %v677 = vpack.c.b16 %v481, %v474
    %v678 = vpack.c.b16 %v482, %v475
    %v679 = vpack.c.b16 %v483, %v476
    %v680 = vpack.c.b16 %v484, %v477
    %v681 = vpack.c.b16 %v492, %v485
    %v682 = vpack.c.b16 %v493, %v486
    %v683 = vpack.c.b16 %v494, %v487
    %v684 = vpack.c.b16 %v495, %v488
    %v685 = vpack.c.b16 %v496, %v489
    %v686 = vpack.c.b16 %v497, %v490
    %v687 = vpack.c.b16 %v498, %v491
    %v688 = vpack.c.b16 %v506, %v499
    %v689 = vpack.c.b16 %v507, %v500
    %v690 = vpack.c.b16 %v508, %v501
    %v691 = vpack.c.b16 %v509, %v502
    %v692 = vpack.c.b16 %v510, %v503
    %v693 = vpack.c.b16 %v511, %v504
    %v694 = vpack.c.b16 %v512, %v505
    %v695 = vpack.c.b16 %v520, %v513
    %v696 = vpack.c.b16 %v521, %v514
    %v697 = vpack.c.b16 %v522, %v515
    %v698 = vpack.c.b16 %v523, %v516
    %v699 = vpack.c.b16 %v524, %v517
    %v700 = vpack.c.b16 %v525, %v518
    %v701 = vpack.c.b16 %v526, %v519
    %v702 = vpack.c.b16 %v534, %v527
    %v703 = vpack.c.b16 %v535, %v528
    %v704 = vpack.c.b16 %v536, %v529
    %v705 = vpack.c.b16 %v537, %v530
    %v706 = vpack.c.b16 %v538, %v531
    %v707 = vpack.c.b16 %v539, %v532
    %v708 = vpack.c.b16 %v540, %v533
    %v709 = vpack.c.b16 %v548, %v541
    %v710 = vpack.c.b16 %v549, %v542
    %v711 = vpack.c.b16 %v550, %v543
    %v712 = vpack.c.b16 %v551, %v544
    %v713 = vpack.c.b16 %v552, %v545
    %v714 = vpack.c.b16 %v553, %v546
    %v715 = vpack.c.b16 %v554, %v547
    %v716 = vpack.c.b16 %v562, %v555
    %v717 = vpack.c.b16 %v563, %v556
    %v718 = vpack.c.b16 %v564, %v557
    %v719 = vpack.c.b16 %v565, %v558
    %v720 = vpack.c.b16 %v566, %v559
    %v721 = vpack.c.b16 %v567, %v560
    %v722 = vpack.c.b16 %v568, %v561
    %v723 = vpack.c.b16 %v576, %v569
    %v724 = vpack.c.b16 %v577, %v570
    %v725 = vpack.c.b16 %v578, %v571
    %v726 = vpack.c.b16 %v579, %v572
    %v727 = vpack.c.b16 %v580, %v573
    %v728 = vpack.c.b16 %v581, %v574
    %v729 = vpack.c.b16 %v582, %v575
    %v730 = vpack.c.b16 %v590, %v583
    %v731 = vpack.c.b16 %v591, %v584
    %v732 = vpack.c.b16 %v592, %v585
    %v733 = vpack.c.b16 %v593, %v586
    %v734 = vpack.c.b16 %v594, %v587
    %v735 = vpack.c.b16 %v595, %v588
    %v736 = vpack.c.b16 %v596, %v589
    %v737 = vpack.c.b16 %v604, %v597
    %v738 = vpack.c.b16 %v605, %v598
    %v739 = vpack.c.b16 %v606, %v599
    %v740 = vpack.c.b16 %v607, %v600
    %v741 = vpack.c.b16 %v608, %v601
    %v742 = vpack.c.b16 %v609, %v602
    %v743 = vpack.c.b16 %v610, %v603
    %v744 = vpack.c.b16 %v618, %v611
    %v745 = vpack.c.b16 %v619, %v612
    %v746 = vpack.c.b16 %v620, %v613
    %v747 = vpack.c.b16 %v621, %v614
    %v748 = vpack.c.b16 %v622, %v615
    %v749 = vpack.c.b16 %v623, %v616
    %v750 = vpack.c.b16 %v624, %v617
    %v751 = vpack.c.b16 %v632, %v625
    %v752 = vpack.c.b16 %v633, %v626
    %v753 = vpack.c.b16 %v634, %v627
    %v754 = vpack.c.b16 %v635, %v628
    %v755 = vpack.c.b16 %v636, %v629
    %v756 = vpack.c.b16 %v637, %v630
    %v757 = vpack.c.b16 %v638, %v631
    %v758 = vpack.c.b16 %v646, %v639
    %v759 = vpack.c.b16 %v647, %v640
    %v760 = vpack.c.b16 %v648, %v641
    %v761 = vpack.c.b16 %v649, %v642
    %v762 = vpack.c.b16 %v650, %v643
    %v763 = vpack.c.b16 %v651, %v644
    %v764 = vpack.c.b16 %v652, %v645
    %877 = vmatpush.bf16.msra.mxu0 %v702
    %878 = vmatpush.bf16.msra.mxu0 %v695
    %879 = vmatpush.bf16.msra.mxu0 %v688
    %880 = vmatpush.bf16.msra.mxu0 %v681
    %881 = vmatpush.bf16.msra.mxu0 %v674
    %882 = vmatpush.bf16.msra.mxu0 %v667
    %883 = vmatpush.bf16.msra.mxu0 %v660
    %884 = vmatpush.bf16.msra.mxu0 %v653
    %885 = vmatmul.bf16.gmra.mxu0 %v141
    %v886 = vpop.f32.mrf.mxu0
    %v887 = vadd.f32 0.0, %v886
    %v888 = vpop.f32.mrf.mxu0
    %v889 = vadd.f32 0.0, %v888
    %890 = vmatmul.bf16.gmra.mxu0 %v142
    %v891 = vpop.f32.mrf.mxu0
    %v892 = vadd.f32 0.0, %v891
    %v893 = vpop.f32.mrf.mxu0
    %v894 = vadd.f32 0.0, %v893
    %895 = vmatmul.bf16.gmra.mxu0 %v143
    %v896 = vpop.f32.mrf.mxu0
    %v897 = vadd.f32 0.0, %v896
    %v898 = vpop.f32.mrf.mxu0
    %v899 = vadd.f32 0.0, %v898
    %900 = vmatmul.bf16.gmra.mxu0 %v144
    %v901 = vpop.f32.mrf.mxu0
    %v902 = vadd.f32 0.0, %v901
    %v903 = vpop.f32.mrf.mxu0
    %v904 = vadd.f32 0.0, %v903
    %905 = vdwg.mxu0
    %906 = vmatpush.bf16.msra.mxu0 %v758
    %907 = vmatpush.bf16.msra.mxu0 %v751
    %908 = vmatpush.bf16.msra.mxu0 %v744
    %909 = vmatpush.bf16.msra.mxu0 %v737
    %910 = vmatpush.bf16.msra.mxu0 %v730
    %911 = vmatpush.bf16.msra.mxu0 %v723
    %912 = vmatpush.bf16.msra.mxu0 %v716
    %913 = vmatpush.bf16.msra.mxu0 %v709
    %914 = vmatmul.bf16.gmra.mxu0 %v165
    %v915 = vpop.f32.mrf.mxu0
    %v916 = vadd.f32 %v887, %v915
    %v917 = vpop.f32.mrf.mxu0
    %v918 = vadd.f32 %v889, %v917
    %919 = vmatmul.bf16.gmra.mxu0 %v166
    %v920 = vpop.f32.mrf.mxu0
    %v921 = vadd.f32 %v892, %v920
    %v922 = vpop.f32.mrf.mxu0
    %v923 = vadd.f32 %v894, %v922
    %924 = vmatmul.bf16.gmra.mxu0 %v167
    %v925 = vpop.f32.mrf.mxu0
    %v926 = vadd.f32 %v897, %v925
    %v927 = vpop.f32.mrf.mxu0
    %v928 = vadd.f32 %v899, %v927
    %929 = vmatmul.bf16.gmra.mxu0 %v168
    %v930 = vpop.f32.mrf.mxu0
    %v931 = vadd.f32 %v902, %v930
    %v932 = vpop.f32.mrf.mxu0
    %v933 = vadd.f32 %v904, %v932
    %934 = vdwg.mxu0
    %935 = vmatpush.bf16.msra.mxu0 %v703
    %936 = vmatpush.bf16.msra.mxu0 %v696
    %937 = vmatpush.bf16.msra.mxu0 %v689
    %938 = vmatpush.bf16.msra.mxu0 %v682
    %939 = vmatpush.bf16.msra.mxu0 %v675
    %940 = vmatpush.bf16.msra.mxu0 %v668
    %941 = vmatpush.bf16.msra.mxu0 %v661
    %942 = vmatpush.bf16.msra.mxu0 %v654
    %943 = vmatmul.bf16.gmra.mxu0 %v141
    %v944 = vpop.f32.mrf.mxu0
    %v945 = vadd.f32 0.0, %v944
    %v946 = vpop.f32.mrf.mxu0
    %v947 = vadd.f32 0.0, %v946
    %948 = vmatmul.bf16.gmra.mxu0 %v142
    %v949 = vpop.f32.mrf.mxu0
    %v950 = vadd.f32 0.0, %v949
    %v951 = vpop.f32.mrf.mxu0
    %v952 = vadd.f32 0.0, %v951
    %953 = vmatmul.bf16.gmra.mxu0 %v143
    %v954 = vpop.f32.mrf.mxu0
    %v955 = vadd.f32 0.0, %v954
    %v956 = vpop.f32.mrf.mxu0
    %v957 = vadd.f32 0.0, %v956
    %958 = vmatmul.bf16.gmra.mxu0 %v144
    %v959 = vpop.f32.mrf.mxu0
    %v960 = vadd.f32 0.0, %v959
    %v961 = vpop.f32.mrf.mxu0
    %v962 = vadd.f32 0.0, %v961
    %963 = vdwg.mxu0
    %964 = vmatpush.bf16.msra.mxu0 %v759
    %965 = vmatpush.bf16.msra.mxu0 %v752
    %966 = vmatpush.bf16.msra.mxu0 %v745
    %967 = vmatpush.bf16.msra.mxu0 %v738
    %968 = vmatpush.bf16.msra.mxu0 %v731
    %969 = vmatpush.bf16.msra.mxu0 %v724
    %970 = vmatpush.bf16.msra.mxu0 %v717
    %971 = vmatpush.bf16.msra.mxu0 %v710
    %972 = vmatmul.bf16.gmra.mxu0 %v165
    %v973 = vpop.f32.mrf.mxu0
    %v974 = vadd.f32 %v945, %v973
    %v975 = vpop.f32.mrf.mxu0
    %v976 = vadd.f32 %v947, %v975
    %977 = vmatmul.bf16.gmra.mxu0 %v166
    %v978 = vpop.f32.mrf.mxu0
    %v979 = vadd.f32 %v950, %v978
    %v980 = vpop.f32.mrf.mxu0
    %v981 = vadd.f32 %v952, %v980
    %982 = vmatmul.bf16.gmra.mxu0 %v167
    %v983 = vpop.f32.mrf.mxu0
    %v984 = vadd.f32 %v955, %v983
    %v985 = vpop.f32.mrf.mxu0
    %v986 = vadd.f32 %v957, %v985
    %987 = vmatmul.bf16.gmra.mxu0 %v168
    %v988 = vpop.f32.mrf.mxu0
    %v989 = vadd.f32 %v960, %v988
    %v990 = vpop.f32.mrf.mxu0
    %v991 = vadd.f32 %v962, %v990
    %992 = vdwg.mxu0
    %993 = vmatpush.bf16.msra.mxu0 %v704
    %994 = vmatpush.bf16.msra.mxu0 %v697
    %995 = vmatpush.bf16.msra.mxu0 %v690
    %996 = vmatpush.bf16.msra.mxu0 %v683
    %997 = vmatpush.bf16.msra.mxu0 %v676
    %998 = vmatpush.bf16.msra.mxu0 %v669
    %999 = vmatpush.bf16.msra.mxu0 %v662
    %1000 = vmatpush.bf16.msra.mxu0 %v655
    %1001 = vmatmul.bf16.gmra.mxu0 %v141
    %v1002 = vpop.f32.mrf.mxu0
    %v1003 = vadd.f32 0.0, %v1002
    %v1004 = vpop.f32.mrf.mxu0
    %v1005 = vadd.f32 0.0, %v1004
    %1006 = vmatmul.bf16.gmra.mxu0 %v142
    %v1007 = vpop.f32.mrf.mxu0
    %v1008 = vadd.f32 0.0, %v1007
    %v1009 = vpop.f32.mrf.mxu0
    %v1010 = vadd.f32 0.0, %v1009
    %1011 = vmatmul.bf16.gmra.mxu0 %v143
    %v1012 = vpop.f32.mrf.mxu0
    %v1013 = vadd.f32 0.0, %v1012
    %v1014 = vpop.f32.mrf.mxu0
    %v1015 = vadd.f32 0.0, %v1014
    %1016 = vmatmul.bf16.gmra.mxu0 %v144
    %v1017 = vpop.f32.mrf.mxu0
    %v1018 = vadd.f32 0.0, %v1017
    %v1019 = vpop.f32.mrf.mxu0
    %v1020 = vadd.f32 0.0, %v1019
    %1021 = vdwg.mxu0
    %1022 = vmatpush.bf16.msra.mxu0 %v760
    %1023 = vmatpush.bf16.msra.mxu0 %v753
    %1024 = vmatpush.bf16.msra.mxu0 %v746
    %1025 = vmatpush.bf16.msra.mxu0 %v739
    %1026 = vmatpush.bf16.msra.mxu0 %v732
    %1027 = vmatpush.bf16.msra.mxu0 %v725
    %1028 = vmatpush.bf16.msra.mxu0 %v718
    %1029 = vmatpush.bf16.msra.mxu0 %v711
    %1030 = vmatmul.bf16.gmra.mxu0 %v165
    %v1031 = vpop.f32.mrf.mxu0
    %v1032 = vadd.f32 %v1003, %v1031
    %v1033 = vpop.f32.mrf.mxu0
    %v1034 = vadd.f32 %v1005, %v1033
    %1035 = vmatmul.bf16.gmra.mxu0 %v166
    %v1036 = vpop.f32.mrf.mxu0
    %v1037 = vadd.f32 %v1008, %v1036
    %v1038 = vpop.f32.mrf.mxu0
    %v1039 = vadd.f32 %v1010, %v1038
    %1040 = vmatmul.bf16.gmra.mxu0 %v167
    %v1041 = vpop.f32.mrf.mxu0
    %v1042 = vadd.f32 %v1013, %v1041
    %v1043 = vpop.f32.mrf.mxu0
    %v1044 = vadd.f32 %v1015, %v1043
    %1045 = vmatmul.bf16.gmra.mxu0 %v168
    %v1046 = vpop.f32.mrf.mxu0
    %v1047 = vadd.f32 %v1018, %v1046
    %v1048 = vpop.f32.mrf.mxu0
    %v1049 = vadd.f32 %v1020, %v1048
    %1050 = vdwg.mxu0
    %1051 = vmatpush.bf16.msra.mxu0 %v705
    %1052 = vmatpush.bf16.msra.mxu0 %v698
    %1053 = vmatpush.bf16.msra.mxu0 %v691
    %1054 = vmatpush.bf16.msra.mxu0 %v684
    %1055 = vmatpush.bf16.msra.mxu0 %v677
    %1056 = vmatpush.bf16.msra.mxu0 %v670
    %1057 = vmatpush.bf16.msra.mxu0 %v663
    %1058 = vmatpush.bf16.msra.mxu0 %v656
    %1059 = vmatmul.bf16.gmra.mxu0 %v141
    %v1060 = vpop.f32.mrf.mxu0
    %v1061 = vadd.f32 0.0, %v1060
    %v1062 = vpop.f32.mrf.mxu0
    %v1063 = vadd.f32 0.0, %v1062
    %1064 = vmatmul.bf16.gmra.mxu0 %v142
    %v1065 = vpop.f32.mrf.mxu0
    %v1066 = vadd.f32 0.0, %v1065
    %v1067 = vpop.f32.mrf.mxu0
    %v1068 = vadd.f32 0.0, %v1067
    %1069 = vmatmul.bf16.gmra.mxu0 %v143
    %v1070 = vpop.f32.mrf.mxu0
    %v1071 = vadd.f32 0.0, %v1070
    %v1072 = vpop.f32.mrf.mxu0
    %v1073 = vadd.f32 0.0, %v1072
    %1074 = vmatmul.bf16.gmra.mxu0 %v144
    %v1075 = vpop.f32.mrf.mxu0
    %v1076 = vadd.f32 0.0, %v1075
    %v1077 = vpop.f32.mrf.mxu0
    %v1078 = vadd.f32 0.0, %v1077
    %1079 = vdwg.mxu0
    %1080 = vmatpush.bf16.msra.mxu0 %v761
    %1081 = vmatpush.bf16.msra.mxu0 %v754
    %1082 = vmatpush.bf16.msra.mxu0 %v747
    %1083 = vmatpush.bf16.msra.mxu0 %v740
    %1084 = vmatpush.bf16.msra.mxu0 %v733
    %1085 = vmatpush.bf16.msra.mxu0 %v726
    %1086 = vmatpush.bf16.msra.mxu0 %v719
    %1087 = vmatpush.bf16.msra.mxu0 %v712
    %1088 = vmatmul.bf16.gmra.mxu0 %v165
    %v1089 = vpop.f32.mrf.mxu0
    %v1090 = vadd.f32 %v1061, %v1089
    %v1091 = vpop.f32.mrf.mxu0
    %v1092 = vadd.f32 %v1063, %v1091
    %1093 = vmatmul.bf16.gmra.mxu0 %v166
    %v1094 = vpop.f32.mrf.mxu0
    %v1095 = vadd.f32 %v1066, %v1094
    %v1096 = vpop.f32.mrf.mxu0
    %v1097 = vadd.f32 %v1068, %v1096
    %1098 = vmatmul.bf16.gmra.mxu0 %v167
    %v1099 = vpop.f32.mrf.mxu0
    %v1100 = vadd.f32 %v1071, %v1099
    %v1101 = vpop.f32.mrf.mxu0
    %v1102 = vadd.f32 %v1073, %v1101
    %1103 = vmatmul.bf16.gmra.mxu0 %v168
    %v1104 = vpop.f32.mrf.mxu0
    %v1105 = vadd.f32 %v1076, %v1104
    %v1106 = vpop.f32.mrf.mxu0
    %v1107 = vadd.f32 %v1078, %v1106
    %1108 = vdwg.mxu0
    %1109 = vmatpush.bf16.msra.mxu0 %v706
    %1110 = vmatpush.bf16.msra.mxu0 %v699
    %1111 = vmatpush.bf16.msra.mxu0 %v692
    %1112 = vmatpush.bf16.msra.mxu0 %v685
    %1113 = vmatpush.bf16.msra.mxu0 %v678
    %1114 = vmatpush.bf16.msra.mxu0 %v671
    %1115 = vmatpush.bf16.msra.mxu0 %v664
    %1116 = vmatpush.bf16.msra.mxu0 %v657
    %1117 = vmatmul.bf16.gmra.mxu0 %v141
    %v1118 = vpop.f32.mrf.mxu0
    %v1119 = vadd.f32 0.0, %v1118
    %v1120 = vpop.f32.mrf.mxu0
    %v1121 = vadd.f32 0.0, %v1120
    %1122 = vmatmul.bf16.gmra.mxu0 %v142
    %v1123 = vpop.f32.mrf.mxu0
    %v1124 = vadd.f32 0.0, %v1123
    %v1125 = vpop.f32.mrf.mxu0
    %v1126 = vadd.f32 0.0, %v1125
    %1127 = vmatmul.bf16.gmra.mxu0 %v143
    %v1128 = vpop.f32.mrf.mxu0
    %v1129 = vadd.f32 0.0, %v1128
    %v1130 = vpop.f32.mrf.mxu0
    %v1131 = vadd.f32 0.0, %v1130
    %1132 = vmatmul.bf16.gmra.mxu0 %v144
    %v1133 = vpop.f32.mrf.mxu0
    %v1134 = vadd.f32 0.0, %v1133
    %v1135 = vpop.f32.mrf.mxu0
    %v1136 = vadd.f32 0.0, %v1135
    %1137 = vdwg.mxu0
    %1138 = vmatpush.bf16.msra.mxu0 %v762
    %1139 = vmatpush.bf16.msra.mxu0 %v755
    %1140 = vmatpush.bf16.msra.mxu0 %v748
    %1141 = vmatpush.bf16.msra.mxu0 %v741
    %1142 = vmatpush.bf16.msra.mxu0 %v734
    %1143 = vmatpush.bf16.msra.mxu0 %v727
    %1144 = vmatpush.bf16.msra.mxu0 %v720
    %1145 = vmatpush.bf16.msra.mxu0 %v713
    %1146 = vmatmul.bf16.gmra.mxu0 %v165
    %v1147 = vpop.f32.mrf.mxu0
    %v1148 = vadd.f32 %v1119, %v1147
    %v1149 = vpop.f32.mrf.mxu0
    %v1150 = vadd.f32 %v1121, %v1149
    %1151 = vmatmul.bf16.gmra.mxu0 %v166
    %v1152 = vpop.f32.mrf.mxu0
    %v1153 = vadd.f32 %v1124, %v1152
    %v1154 = vpop.f32.mrf.mxu0
    %v1155 = vadd.f32 %v1126, %v1154
    %1156 = vmatmul.bf16.gmra.mxu0 %v167
    %v1157 = vpop.f32.mrf.mxu0
    %v1158 = vadd.f32 %v1129, %v1157
    %v1159 = vpop.f32.mrf.mxu0
    %v1160 = vadd.f32 %v1131, %v1159
    %1161 = vmatmul.bf16.gmra.mxu0 %v168
    %v1162 = vpop.f32.mrf.mxu0
    %v1163 = vadd.f32 %v1134, %v1162
    %v1164 = vpop.f32.mrf.mxu0
    %v1165 = vadd.f32 %v1136, %v1164
    %1166 = vdwg.mxu0
    %1167 = vmatpush.bf16.msra.mxu0 %v707
    %1168 = vmatpush.bf16.msra.mxu0 %v700
    %1169 = vmatpush.bf16.msra.mxu0 %v693
    %1170 = vmatpush.bf16.msra.mxu0 %v686
    %1171 = vmatpush.bf16.msra.mxu0 %v679
    %1172 = vmatpush.bf16.msra.mxu0 %v672
    %1173 = vmatpush.bf16.msra.mxu0 %v665
    %1174 = vmatpush.bf16.msra.mxu0 %v658
    %1175 = vmatmul.bf16.gmra.mxu0 %v141
    %v1176 = vpop.f32.mrf.mxu0
    %v1177 = vadd.f32 0.0, %v1176
    %v1178 = vpop.f32.mrf.mxu0
    %v1179 = vadd.f32 0.0, %v1178
    %1180 = vmatmul.bf16.gmra.mxu0 %v142
    %v1181 = vpop.f32.mrf.mxu0
    %v1182 = vadd.f32 0.0, %v1181
    %v1183 = vpop.f32.mrf.mxu0
    %v1184 = vadd.f32 0.0, %v1183
    %1185 = vmatmul.bf16.gmra.mxu0 %v143
    %v1186 = vpop.f32.mrf.mxu0
    %v1187 = vadd.f32 0.0, %v1186
    %v1188 = vpop.f32.mrf.mxu0
    %v1189 = vadd.f32 0.0, %v1188
    %1190 = vmatmul.bf16.gmra.mxu0 %v144
    %v1191 = vpop.f32.mrf.mxu0
    %v1192 = vadd.f32 0.0, %v1191
    %v1193 = vpop.f32.mrf.mxu0
    %v1194 = vadd.f32 0.0, %v1193
    %1195 = vdwg.mxu0
    %1196 = vmatpush.bf16.msra.mxu0 %v763
    %1197 = vmatpush.bf16.msra.mxu0 %v756
    %1198 = vmatpush.bf16.msra.mxu0 %v749
    %1199 = vmatpush.bf16.msra.mxu0 %v742
    %1200 = vmatpush.bf16.msra.mxu0 %v735
    %1201 = vmatpush.bf16.msra.mxu0 %v728
    %1202 = vmatpush.bf16.msra.mxu0 %v721
    %1203 = vmatpush.bf16.msra.mxu0 %v714
    %1204 = vmatmul.bf16.gmra.mxu0 %v165
    %v1205 = vpop.f32.mrf.mxu0
    %v1206 = vadd.f32 %v1177, %v1205
    %v1207 = vpop.f32.mrf.mxu0
    %v1208 = vadd.f32 %v1179, %v1207
    %1209 = vmatmul.bf16.gmra.mxu0 %v166
    %v1210 = vpop.f32.mrf.mxu0
    %v1211 = vadd.f32 %v1182, %v1210
    %v1212 = vpop.f32.mrf.mxu0
    %v1213 = vadd.f32 %v1184, %v1212
    %1214 = vmatmul.bf16.gmra.mxu0 %v167
    %v1215 = vpop.f32.mrf.mxu0
    %v1216 = vadd.f32 %v1187, %v1215
    %v1217 = vpop.f32.mrf.mxu0
    %v1218 = vadd.f32 %v1189, %v1217
    %1219 = vmatmul.bf16.gmra.mxu0 %v168
    %v1220 = vpop.f32.mrf.mxu0
    %v1221 = vadd.f32 %v1192, %v1220
    %v1222 = vpop.f32.mrf.mxu0
    %v1223 = vadd.f32 %v1194, %v1222
    %1224 = vdwg.mxu0
    %1225 = vmatpush.bf16.msra.mxu0 %v708
    %1226 = vmatpush.bf16.msra.mxu0 %v701
    %1227 = vmatpush.bf16.msra.mxu0 %v694
    %1228 = vmatpush.bf16.msra.mxu0 %v687
    %1229 = vmatpush.bf16.msra.mxu0 %v680
    %1230 = vmatpush.bf16.msra.mxu0 %v673
    %1231 = vmatpush.bf16.msra.mxu0 %v666
    %1232 = vmatpush.bf16.msra.mxu0 %v659
    %1233 = vmatmul.bf16.gmra.mxu0 %v141
    %v1234 = vpop.f32.mrf.mxu0
    %v1235 = vadd.f32 0.0, %v1234
    %v1236 = vpop.f32.mrf.mxu0
    %v1237 = vadd.f32 0.0, %v1236
    %1238 = vmatmul.bf16.gmra.mxu0 %v142
    %v1239 = vpop.f32.mrf.mxu0
    %v1240 = vadd.f32 0.0, %v1239
    %v1241 = vpop.f32.mrf.mxu0
    %v1242 = vadd.f32 0.0, %v1241
    %1243 = vmatmul.bf16.gmra.mxu0 %v143
    %v1244 = vpop.f32.mrf.mxu0
    %v1245 = vadd.f32 0.0, %v1244
    %v1246 = vpop.f32.mrf.mxu0
    %v1247 = vadd.f32 0.0, %v1246
    %1248 = vmatmul.bf16.gmra.mxu0 %v144
    %v1249 = vpop.f32.mrf.mxu0
    %v1250 = vadd.f32 0.0, %v1249
    %v1251 = vpop.f32.mrf.mxu0
    %v1252 = vadd.f32 0.0, %v1251
    %1253 = vdwg.mxu0
    %1254 = vmatpush.bf16.msra.mxu0 %v764
    %1255 = vmatpush.bf16.msra.mxu0 %v757
    %1256 = vmatpush.bf16.msra.mxu0 %v750
    %1257 = vmatpush.bf16.msra.mxu0 %v743
    %1258 = vmatpush.bf16.msra.mxu0 %v736
    %1259 = vmatpush.bf16.msra.mxu0 %v729
    %1260 = vmatpush.bf16.msra.mxu0 %v722
    %1261 = vmatpush.bf16.msra.mxu0 %v715
    %1262 = vmatmul.bf16.gmra.mxu0 %v165
    %v1263 = vpop.f32.mrf.mxu0
    %v1264 = vadd.f32 %v1235, %v1263
    %v1265 = vpop.f32.mrf.mxu0
    %v1266 = vadd.f32 %v1237, %v1265
    %1267 = vmatmul.bf16.gmra.mxu0 %v166
    %v1268 = vpop.f32.mrf.mxu0
    %v1269 = vadd.f32 %v1240, %v1268
    %v1270 = vpop.f32.mrf.mxu0
    %v1271 = vadd.f32 %v1242, %v1270
    %1272 = vmatmul.bf16.gmra.mxu0 %v167
    %v1273 = vpop.f32.mrf.mxu0
    %v1274 = vadd.f32 %v1245, %v1273
    %v1275 = vpop.f32.mrf.mxu0
    %v1276 = vadd.f32 %v1247, %v1275
    %1277 = vmatmul.bf16.gmra.mxu0 %v168
    %v1278 = vpop.f32.mrf.mxu0
    %v1279 = vadd.f32 %v1250, %v1278
    %v1280 = vpop.f32.mrf.mxu0
    %v1281 = vadd.f32 %v1252, %v1280
    %1282 = vdwg.mxu0
    %v1283 = vrot.slane %v974, 2
    %v1284 = vrot.slane %v976, 2
    %v1285 = vrot.slane %v979, 2
    %v1286 = vrot.slane %v981, 2
    %v1287 = vrot.slane %v984, 2
    %v1288 = vrot.slane %v986, 2
    %v1289 = vrot.slane %v989, 2
    %v1290 = vrot.slane %v991, 2
    %vm1291 = vcmp.lt.s32.totalorder %v107, 6
    %v1292 = vsel %vm1291, %v1289, %v1290
    %v1293 = vsel %vm1291, %v1288, %v1289
    %v1294 = vsel %vm1291, %v1287, %v1288
    %v1295 = vsel %vm1291, %v1286, %v1287
    %v1296 = vsel %vm1291, %v1285, %v1286
    %v1297 = vsel %vm1291, %v1284, %v1285
    %v1298 = vsel %vm1291, %v1283, %v1284
    %v1299 = vsel %vm1291, %v1290, %v1283
    %v1300 = vadd.f32 %v916, %v1298
    %v1301 = vadd.f32 %v918, %v1297
    %v1302 = vadd.f32 %v921, %v1296
    %v1303 = vadd.f32 %v923, %v1295
    %v1304 = vadd.f32 %v926, %v1294
    %v1305 = vadd.f32 %v928, %v1293
    %v1306 = vadd.f32 %v931, %v1292
    %v1307 = vadd.f32 %v933, %v1299
    %v1308 = vrot.slane %v1090, 2
    %v1309 = vrot.slane %v1092, 2
    %v1310 = vrot.slane %v1095, 2
    %v1311 = vrot.slane %v1097, 2
    %v1312 = vrot.slane %v1100, 2
    %v1313 = vrot.slane %v1102, 2
    %v1314 = vrot.slane %v1105, 2
    %v1315 = vrot.slane %v1107, 2
    %v1316 = vsel %vm1291, %v1314, %v1315
    %v1317 = vsel %vm1291, %v1313, %v1314
    %v1318 = vsel %vm1291, %v1312, %v1313
    %v1319 = vsel %vm1291, %v1311, %v1312
    %v1320 = vsel %vm1291, %v1310, %v1311
    %v1321 = vsel %vm1291, %v1309, %v1310
    %v1322 = vsel %vm1291, %v1308, %v1309
    %v1323 = vsel %vm1291, %v1315, %v1308
    %v1324 = vadd.f32 %v1032, %v1322
    %v1325 = vadd.f32 %v1034, %v1321
    %v1326 = vadd.f32 %v1037, %v1320
    %v1327 = vadd.f32 %v1039, %v1319
    %v1328 = vadd.f32 %v1042, %v1318
    %v1329 = vadd.f32 %v1044, %v1317
    %v1330 = vadd.f32 %v1047, %v1316
    %v1331 = vadd.f32 %v1049, %v1323
    %v1332 = vrot.slane %v1206, 2
    %v1333 = vrot.slane %v1208, 2
    %v1334 = vrot.slane %v1211, 2
    %v1335 = vrot.slane %v1213, 2
    %v1336 = vrot.slane %v1216, 2
    %v1337 = vrot.slane %v1218, 2
    %v1338 = vrot.slane %v1221, 2
    %v1339 = vrot.slane %v1223, 2
    %v1340 = vsel %vm1291, %v1338, %v1339
    %v1341 = vsel %vm1291, %v1337, %v1338
    %v1342 = vsel %vm1291, %v1336, %v1337
    %v1343 = vsel %vm1291, %v1335, %v1336
    %v1344 = vsel %vm1291, %v1334, %v1335
    %v1345 = vsel %vm1291, %v1333, %v1334
    %v1346 = vsel %vm1291, %v1332, %v1333
    %v1347 = vsel %vm1291, %v1339, %v1332
    %v1348 = vadd.f32 %v1148, %v1346
    %v1349 = vadd.f32 %v1150, %v1345
    %v1350 = vadd.f32 %v1153, %v1344
    %v1351 = vadd.f32 %v1155, %v1343
    %v1352 = vadd.f32 %v1158, %v1342
    %v1353 = vadd.f32 %v1160, %v1341
    %v1354 = vadd.f32 %v1163, %v1340
    %v1355 = vadd.f32 %v1165, %v1347
    %v1356 = vrot.slane %v1264, 4
    %v1357 = vrot.slane %v1266, 4
    %v1358 = vrot.slane %v1269, 4
    %v1359 = vrot.slane %v1271, 4
    %v1360 = vrot.slane %v1274, 4
    %v1361 = vrot.slane %v1276, 4
    %v1362 = vrot.slane %v1279, 4
    %v1363 = vrot.slane %v1281, 4
    %vm1364 = vcmp.lt.s32.totalorder %v107, 4
    %v1365 = vsel %vm1364, %v1362, %v1363
    %v1366 = vsel %vm1364, %v1361, %v1362
    %v1367 = vsel %vm1364, %v1360, %v1361
    %v1368 = vsel %vm1364, %v1359, %v1360
    %v1369 = vsel %vm1364, %v1358, %v1359
    %v1370 = vsel %vm1364, %v1357, %v1358
    %v1371 = vsel %vm1364, %v1356, %v1357
    %v1372 = vsel %vm1364, %v1363, %v1356
    %v1373 = vadd.f32 %v1348, %v1371
    %v1374 = vadd.f32 %v1349, %v1370
    %v1375 = vadd.f32 %v1350, %v1369
    %v1376 = vadd.f32 %v1351, %v1368
    %v1377 = vadd.f32 %v1352, %v1367
    %v1378 = vadd.f32 %v1353, %v1366
    %v1379 = vadd.f32 %v1354, %v1365
    %v1380 = vadd.f32 %v1355, %v1372
    %v1381 = vld [vmem:[#allocation7] sm:$0x7]
    %v1382 = vsel %vm1291, %v1300, -1e+30
    %v1383 = vsel %vm1291, %v1301, -1e+30
    %v1384 = vsel %vm1291, %v1302, -1e+30
    %v1385 = vsel %vm1291, %v1303, -1e+30
    %v1386 = vsel %vm1291, %v1304, -1e+30
    %v1387 = vsel %vm1291, %v1305, -1e+30
    %v1388 = vsel %vm1291, %v1306, -1e+30
    %v1389 = vsel %vm1291, %v1307, -1e+30
    %v1390 = vrot.slane %v1382, 4
    %v1391 = vmax.f32 %v1382, %v1390
    %v1392 = vrot.slane %v1391, 2
    %v1393 = vmax.f32 %v1391, %v1392
    %v1394 = vrot.slane %v1393, 1
    %v1395 = vmax.f32 %v1393, %v1394
    %v1396 = vrot.slane %v1383, 4
    %v1397 = vmax.f32 %v1383, %v1396
    %v1398 = vrot.slane %v1397, 2
    %v1399 = vmax.f32 %v1397, %v1398
    %v1400 = vrot.slane %v1399, 1
    %v1401 = vmax.f32 %v1399, %v1400
    %v1402 = vrot.slane %v1384, 4
    %v1403 = vmax.f32 %v1384, %v1402
    %v1404 = vrot.slane %v1403, 2
    %v1405 = vmax.f32 %v1403, %v1404
    %v1406 = vrot.slane %v1405, 1
    %v1407 = vmax.f32 %v1405, %v1406
    %v1408 = vrot.slane %v1385, 4
    %v1409 = vmax.f32 %v1385, %v1408
    %v1410 = vrot.slane %v1409, 2
    %v1411 = vmax.f32 %v1409, %v1410
    %v1412 = vrot.slane %v1411, 1
    %v1413 = vmax.f32 %v1411, %v1412
    %v1414 = vrot.slane %v1386, 4
    %v1415 = vmax.f32 %v1386, %v1414
    %v1416 = vrot.slane %v1415, 2
    %v1417 = vmax.f32 %v1415, %v1416
    %v1418 = vrot.slane %v1417, 1
    %v1419 = vmax.f32 %v1417, %v1418
    %v1420 = vrot.slane %v1387, 4
    %v1421 = vmax.f32 %v1387, %v1420
    %v1422 = vrot.slane %v1421, 2
    %v1423 = vmax.f32 %v1421, %v1422
    %v1424 = vrot.slane %v1423, 1
    %v1425 = vmax.f32 %v1423, %v1424
    %v1426 = vrot.slane %v1388, 4
    %v1427 = vmax.f32 %v1388, %v1426
    %v1428 = vrot.slane %v1427, 2
    %v1429 = vmax.f32 %v1427, %v1428
    %v1430 = vrot.slane %v1429, 1
    %v1431 = vmax.f32 %v1429, %v1430
    %v1432 = vrot.slane %v1389, 4
    %v1433 = vmax.f32 %v1389, %v1432
    %v1434 = vrot.slane %v1433, 2
    %v1435 = vmax.f32 %v1433, %v1434
    %v1436 = vrot.slane %v1435, 1
    %v1437 = vmax.f32 %v1435, %v1436
    %v1438 = vperm.slane %v1381, 0
    %v1439 = vadd.f32 %v1395, %v1438
    %v1440 = vadd.f32 %v1401, %v1438
    %v1441 = vadd.f32 %v1407, %v1438
    %v1442 = vadd.f32 %v1413, %v1438
    %v1443 = vadd.f32 %v1419, %v1438
    %v1444 = vadd.f32 %v1425, %v1438
    %v1445 = vadd.f32 %v1431, %v1438
    %v1446 = vadd.f32 %v1437, %v1438
    %v1447 = vmax.f32 %v1439, 0.0
    %v1448 = vmax.f32 %v1440, 0.0
    %v1449 = vmax.f32 %v1441, 0.0
    %v1450 = vmax.f32 %v1442, 0.0
    %v1451 = vmax.f32 %v1443, 0.0
    %v1452 = vmax.f32 %v1444, 0.0
    %v1453 = vmax.f32 %v1445, 0.0
    %v1454 = vmax.f32 %v1446, 0.0
    %vm1455 = vcmp.lt.s32.totalorder %v107, 5
    %v1456 = vsel %vm1455, %v1324, -1e+30
    %v1457 = vsel %vm1455, %v1325, -1e+30
    %v1458 = vsel %vm1455, %v1326, -1e+30
    %v1459 = vsel %vm1455, %v1327, -1e+30
    %v1460 = vsel %vm1455, %v1328, -1e+30
    %v1461 = vsel %vm1455, %v1329, -1e+30
    %v1462 = vsel %vm1455, %v1330, -1e+30
    %v1463 = vsel %vm1455, %v1331, -1e+30
    %v1464 = vrot.slane %v1456, 4
    %v1465 = vmax.f32 %v1456, %v1464
    %v1466 = vrot.slane %v1465, 2
    %v1467 = vmax.f32 %v1465, %v1466
    %v1468 = vrot.slane %v1467, 1
    %v1469 = vmax.f32 %v1467, %v1468
    %v1470 = vrot.slane %v1457, 4
    %v1471 = vmax.f32 %v1457, %v1470
    %v1472 = vrot.slane %v1471, 2
    %v1473 = vmax.f32 %v1471, %v1472
    %v1474 = vrot.slane %v1473, 1
    %v1475 = vmax.f32 %v1473, %v1474
    %v1476 = vrot.slane %v1458, 4
    %v1477 = vmax.f32 %v1458, %v1476
    %v1478 = vrot.slane %v1477, 2
    %v1479 = vmax.f32 %v1477, %v1478
    %v1480 = vrot.slane %v1479, 1
    %v1481 = vmax.f32 %v1479, %v1480
    %v1482 = vrot.slane %v1459, 4
    %v1483 = vmax.f32 %v1459, %v1482
    %v1484 = vrot.slane %v1483, 2
    %v1485 = vmax.f32 %v1483, %v1484
    %v1486 = vrot.slane %v1485, 1
    %v1487 = vmax.f32 %v1485, %v1486
    %v1488 = vrot.slane %v1460, 4
    %v1489 = vmax.f32 %v1460, %v1488
    %v1490 = vrot.slane %v1489, 2
    %v1491 = vmax.f32 %v1489, %v1490
    %v1492 = vrot.slane %v1491, 1
    %v1493 = vmax.f32 %v1491, %v1492
    %v1494 = vrot.slane %v1461, 4
    %v1495 = vmax.f32 %v1461, %v1494
    %v1496 = vrot.slane %v1495, 2
    %v1497 = vmax.f32 %v1495, %v1496
    %v1498 = vrot.slane %v1497, 1
    %v1499 = vmax.f32 %v1497, %v1498
    %v1500 = vrot.slane %v1462, 4
    %v1501 = vmax.f32 %v1462, %v1500
    %v1502 = vrot.slane %v1501, 2
    %v1503 = vmax.f32 %v1501, %v1502
    %v1504 = vrot.slane %v1503, 1
    %v1505 = vmax.f32 %v1503, %v1504
    %v1506 = vrot.slane %v1463, 4
    %v1507 = vmax.f32 %v1463, %v1506
    %v1508 = vrot.slane %v1507, 2
    %v1509 = vmax.f32 %v1507, %v1508
    %v1510 = vrot.slane %v1509, 1
    %v1511 = vmax.f32 %v1509, %v1510
    %v1512 = vperm.slane %v1381, 1
    %v1513 = vadd.f32 %v1469, %v1512
    %v1514 = vadd.f32 %v1475, %v1512
    %v1515 = vadd.f32 %v1481, %v1512
    %v1516 = vadd.f32 %v1487, %v1512
    %v1517 = vadd.f32 %v1493, %v1512
    %v1518 = vadd.f32 %v1499, %v1512
    %v1519 = vadd.f32 %v1505, %v1512
    %v1520 = vadd.f32 %v1511, %v1512
    %v1521 = vmax.f32 %v1513, 0.0
    %v1522 = vmax.f32 %v1514, 0.0
    %v1523 = vmax.f32 %v1515, 0.0
    %v1524 = vmax.f32 %v1516, 0.0
    %v1525 = vmax.f32 %v1517, 0.0
    %v1526 = vmax.f32 %v1518, 0.0
    %v1527 = vmax.f32 %v1519, 0.0
    %v1528 = vmax.f32 %v1520, 0.0
    %v1529 = vsel %vm1364, %v1373, -1e+30
    %v1530 = vsel %vm1364, %v1374, -1e+30
    %v1531 = vsel %vm1364, %v1375, -1e+30
    %v1532 = vsel %vm1364, %v1376, -1e+30
    %v1533 = vsel %vm1364, %v1377, -1e+30
    %v1534 = vsel %vm1364, %v1378, -1e+30
    %v1535 = vsel %vm1364, %v1379, -1e+30
    %v1536 = vsel %vm1364, %v1380, -1e+30
    %v1537 = vrot.slane %v1529, 4
    %v1538 = vmax.f32 %v1529, %v1537
    %v1539 = vrot.slane %v1538, 2
    %v1540 = vmax.f32 %v1538, %v1539
    %v1541 = vrot.slane %v1540, 1
    %v1542 = vmax.f32 %v1540, %v1541
    %v1543 = vrot.slane %v1530, 4
    %v1544 = vmax.f32 %v1530, %v1543
    %v1545 = vrot.slane %v1544, 2
    %v1546 = vmax.f32 %v1544, %v1545
    %v1547 = vrot.slane %v1546, 1
    %v1548 = vmax.f32 %v1546, %v1547
    %v1549 = vrot.slane %v1531, 4
    %v1550 = vmax.f32 %v1531, %v1549
    %v1551 = vrot.slane %v1550, 2
    %v1552 = vmax.f32 %v1550, %v1551
    %v1553 = vrot.slane %v1552, 1
    %v1554 = vmax.f32 %v1552, %v1553
    %v1555 = vrot.slane %v1532, 4
    %v1556 = vmax.f32 %v1532, %v1555
    %v1557 = vrot.slane %v1556, 2
    %v1558 = vmax.f32 %v1556, %v1557
    %v1559 = vrot.slane %v1558, 1
    %v1560 = vmax.f32 %v1558, %v1559
    %v1561 = vrot.slane %v1533, 4
    %v1562 = vmax.f32 %v1533, %v1561
    %v1563 = vrot.slane %v1562, 2
    %v1564 = vmax.f32 %v1562, %v1563
    %v1565 = vrot.slane %v1564, 1
    %v1566 = vmax.f32 %v1564, %v1565
    %v1567 = vrot.slane %v1534, 4
    %v1568 = vmax.f32 %v1534, %v1567
    %v1569 = vrot.slane %v1568, 2
    %v1570 = vmax.f32 %v1568, %v1569
    %v1571 = vrot.slane %v1570, 1
    %v1572 = vmax.f32 %v1570, %v1571
    %v1573 = vrot.slane %v1535, 4
    %v1574 = vmax.f32 %v1535, %v1573
    %v1575 = vrot.slane %v1574, 2
    %v1576 = vmax.f32 %v1574, %v1575
    %v1577 = vrot.slane %v1576, 1
    %v1578 = vmax.f32 %v1576, %v1577
    %v1579 = vrot.slane %v1536, 4
    %v1580 = vmax.f32 %v1536, %v1579
    %v1581 = vrot.slane %v1580, 2
    %v1582 = vmax.f32 %v1580, %v1581
    %v1583 = vrot.slane %v1582, 1
    %v1584 = vmax.f32 %v1582, %v1583
    %v1585 = vperm.slane %v1381, 2
    %v1586 = vadd.f32 %v1542, %v1585
    %v1587 = vadd.f32 %v1548, %v1585
    %v1588 = vadd.f32 %v1554, %v1585
    %v1589 = vadd.f32 %v1560, %v1585
    %v1590 = vadd.f32 %v1566, %v1585
    %v1591 = vadd.f32 %v1572, %v1585
    %v1592 = vadd.f32 %v1578, %v1585
    %v1593 = vadd.f32 %v1584, %v1585
    %v1594 = vmax.f32 %v1586, 0.0
    %v1595 = vmax.f32 %v1587, 0.0
    %v1596 = vmax.f32 %v1588, 0.0
    %v1597 = vmax.f32 %v1589, 0.0
    %v1598 = vmax.f32 %v1590, 0.0
    %v1599 = vmax.f32 %v1591, 0.0
    %v1600 = vmax.f32 %v1592, 0.0
    %v1601 = vmax.f32 %v1593, 0.0
    %v1610 = vrot.slane %v1448, 7
    %vm1611 = vcmask 1041409
    %v1612 = vsel %vm1611, %v1610, %v1447
    %v1613 = vrot.slane %v1449, 6
    %vm1614 = vcmask 1042434
    %v1615 = vsel %vm1614, %v1613, %v1612
    %v1616 = vrot.slane %v1450, 5
    %vm1617 = vcmask 1043459
    %v1618 = vsel %vm1617, %v1616, %v1615
    %v1619 = vrot.slane %v1451, 4
    %vm1620 = vcmask 1044484
    %v1621 = vsel %vm1620, %v1619, %v1618
    %v1622 = vrot.slane %v1452, 3
    %vm1623 = vcmask 1045509
    %v1624 = vsel %vm1623, %v1622, %v1621
    %v1625 = vrot.slane %v1453, 2
    %vm1626 = vcmask 1046534
    %v1627 = vsel %vm1626, %v1625, %v1624
    %v1628 = vrot.slane %v1454, 1
    %vm1629 = vcmask 1047559
    %v1630 = vsel %vm1629, %v1628, %v1627
    %v1640 = vrot.slane %v1522, 7
    %v1641 = vsel %vm1611, %v1640, %v1521
    %v1642 = vrot.slane %v1523, 6
    %v1643 = vsel %vm1614, %v1642, %v1641
    %v1644 = vrot.slane %v1524, 5
    %v1645 = vsel %vm1617, %v1644, %v1643
    %v1646 = vrot.slane %v1525, 4
    %v1647 = vsel %vm1620, %v1646, %v1645
    %v1648 = vrot.slane %v1526, 3
    %v1649 = vsel %vm1623, %v1648, %v1647
    %v1650 = vrot.slane %v1527, 2
    %v1651 = vsel %vm1626, %v1650, %v1649
    %v1652 = vrot.slane %v1528, 1
    %v1653 = vsel %vm1629, %v1652, %v1651
    %v1663 = vrot.slane %v1595, 7
    %v1664 = vsel %vm1611, %v1663, %v1594
    %v1665 = vrot.slane %v1596, 6
    %v1666 = vsel %vm1614, %v1665, %v1664
    %v1667 = vrot.slane %v1597, 5
    %v1668 = vsel %vm1617, %v1667, %v1666
    %v1669 = vrot.slane %v1598, 4
    %v1670 = vsel %vm1620, %v1669, %v1668
    %v1671 = vrot.slane %v1599, 3
    %v1672 = vsel %vm1623, %v1671, %v1670
    %v1673 = vrot.slane %v1600, 2
    %v1674 = vsel %vm1626, %v1673, %v1672
    %v1675 = vrot.slane %v1601, 1
    %v1676 = vsel %vm1629, %v1675, %v1674
    %v1678 = vld [vmem:[#allocation8] sm:$0xff]
    %v1679 = vld [vmem:[#allocation8 + $0x8] sm:$0xff]
    %v1680 = vld [vmem:[#allocation8 + $0x10] sm:$0xff]
    %v1681 = vld [vmem:[#allocation8 + $0x18] sm:$0xff]
    %v1682 = vld [vmem:[#allocation8 + $0x20] sm:$0xff]
    %v1683 = vld [vmem:[#allocation8 + $0x28] sm:$0xff]
    %v1684 = vld [vmem:[#allocation8 + $0x30] sm:$0xff]
    %v1685 = vld [vmem:[#allocation8 + $0x38] sm:$0xff]
    %v1686 = vld [vmem:[#allocation8 + $0x40] sm:$0xff]
    %v1687 = vld [vmem:[#allocation8 + $0x48] sm:$0xff]
    %v1688 = vld [vmem:[#allocation8 + $0x50] sm:$0xff]
    %v1689 = vld [vmem:[#allocation8 + $0x58] sm:$0xff]
    %v1690 = vld [vmem:[#allocation8 + $0x60] sm:$0xff]
    %v1691 = vld [vmem:[#allocation8 + $0x68] sm:$0xff]
    %v1692 = vld [vmem:[#allocation8 + $0x70] sm:$0xff]
    %v1693 = vld [vmem:[#allocation8 + $0x78] sm:$0xff]
    %v1694 = vld [vmem:[#allocation8 + $0x80] sm:$0xff]
    %v1695 = vld [vmem:[#allocation8 + $0x88] sm:$0xff]
    %v1696 = vld [vmem:[#allocation8 + $0x90] sm:$0xff]
    %v1697 = vld [vmem:[#allocation8 + $0x98] sm:$0xff]
    %v1698 = vld [vmem:[#allocation8 + $0xa0] sm:$0xff]
    %v1699 = vld [vmem:[#allocation8 + $0xa8] sm:$0xff]
    %v1700 = vld [vmem:[#allocation8 + $0xb0] sm:$0xff]
    %v1701 = vld [vmem:[#allocation8 + $0xb8] sm:$0xff]
    %v1702 = vld [vmem:[#allocation8 + $0xc0] sm:$0xff]
    %v1703 = vld [vmem:[#allocation8 + $0xc8] sm:$0xff]
    %v1704 = vld [vmem:[#allocation8 + $0xd0] sm:$0xff]
    %v1705 = vld [vmem:[#allocation8 + $0xd8] sm:$0xff]
    %v1706 = vld [vmem:[#allocation8 + $0xe0] sm:$0xff]
    %v1707 = vld [vmem:[#allocation8 + $0xe8] sm:$0xff]
    %v1708 = vld [vmem:[#allocation8 + $0xf0] sm:$0xff]
    %v1709 = vld [vmem:[#allocation8 + $0xf8] sm:$0xff]
    %v1710 = vld [vmem:[#allocation8 + $0x100] sm:$0xff]
    %v1711 = vld [vmem:[#allocation8 + $0x108] sm:$0xff]
    %v1712 = vld [vmem:[#allocation8 + $0x110] sm:$0xff]
    %v1713 = vld [vmem:[#allocation8 + $0x118] sm:$0xff]
    %v1714 = vld [vmem:[#allocation8 + $0x120] sm:$0xff]
    %v1715 = vld [vmem:[#allocation8 + $0x128] sm:$0xff]
    %v1716 = vld [vmem:[#allocation8 + $0x130] sm:$0xff]
    %v1717 = vld [vmem:[#allocation8 + $0x138] sm:$0xff]
    %v1718 = vld [vmem:[#allocation8 + $0x140] sm:$0xff]
    %v1719 = vld [vmem:[#allocation8 + $0x148] sm:$0xff]
    %v1720 = vld [vmem:[#allocation8 + $0x150] sm:$0xff]
    %v1721 = vld [vmem:[#allocation8 + $0x158] sm:$0xff]
    %v1722 = vld [vmem:[#allocation8 + $0x160] sm:$0xff]
    %v1723 = vld [vmem:[#allocation8 + $0x168] sm:$0xff]
    %v1724 = vld [vmem:[#allocation8 + $0x170] sm:$0xff]
    %v1725 = vld [vmem:[#allocation8 + $0x178] sm:$0xff]
    %v1726 = vld [vmem:[%s4] sm:$0x1]
    %v1728 = vperm.slane %v1726, 0
    %1730 = vmatpush.msra.mxu0 %v1693
    %1731 = vmatpush.msra.mxu0 %v1692
    %1732 = vmatpush.msra.mxu0 %v1691
    %1733 = vmatpush.msra.mxu0 %v1690
    %1734 = vmatpush.msra.mxu0 %v1689
    %1735 = vmatpush.msra.mxu0 %v1688
    %1736 = vmatpush.msra.mxu0 %v1687
    %1737 = vmatpush.msra.mxu0 %v1686
    %1738 = vmatpush.msra.mxu0 %v1685
    %1739 = vmatpush.msra.mxu0 %v1684
    %1740 = vmatpush.msra.mxu0 %v1683
    %1741 = vmatpush.msra.mxu0 %v1682
    %1742 = vmatpush.msra.mxu0 %v1681
    %1743 = vmatpush.msra.mxu0 %v1680
    %1744 = vmatpush.msra.mxu0 %v1679
    %1745 = vmatpush.msra.mxu0 %v1678
    %1746 = vmatmul.f32.gmra.mxu0 %v1630
    %v1747 = vpop.f32.mrf.mxu0
    %v1748 = vadd.f32 %v1728, %v1747
    %1749 = vdwg.mxu0
    %1750 = vmatpush.msra.mxu0 %v1709
    %1751 = vmatpush.msra.mxu0 %v1708
    %1752 = vmatpush.msra.mxu0 %v1707
    %1753 = vmatpush.msra.mxu0 %v1706
    %1754 = vmatpush.msra.mxu0 %v1705
    %1755 = vmatpush.msra.mxu0 %v1704
    %1756 = vmatpush.msra.mxu0 %v1703
    %1757 = vmatpush.msra.mxu0 %v1702
    %1758 = vmatpush.msra.mxu0 %v1701
    %1759 = vmatpush.msra.mxu0 %v1700
    %1760 = vmatpush.msra.mxu0 %v1699
    %1761 = vmatpush.msra.mxu0 %v1698
    %1762 = vmatpush.msra.mxu0 %v1697
    %1763 = vmatpush.msra.mxu0 %v1696
    %1764 = vmatpush.msra.mxu0 %v1695
    %1765 = vmatpush.msra.mxu0 %v1694
    %1766 = vmatmul.f32.gmra.mxu0 %v1653
    %v1767 = vpop.f32.mrf.mxu0
    %v1768 = vadd.f32 %v1748, %v1767
    %1769 = vdwg.mxu0
    %1770 = vmatpush.msra.mxu0 %v1725
    %1771 = vmatpush.msra.mxu0 %v1724
    %1772 = vmatpush.msra.mxu0 %v1723
    %1773 = vmatpush.msra.mxu0 %v1722
    %1774 = vmatpush.msra.mxu0 %v1721
    %1775 = vmatpush.msra.mxu0 %v1720
    %1776 = vmatpush.msra.mxu0 %v1719
    %1777 = vmatpush.msra.mxu0 %v1718
    %1778 = vmatpush.msra.mxu0 %v1717
    %1779 = vmatpush.msra.mxu0 %v1716
    %1780 = vmatpush.msra.mxu0 %v1715
    %1781 = vmatpush.msra.mxu0 %v1714
    %1782 = vmatpush.msra.mxu0 %v1713
    %1783 = vmatpush.msra.mxu0 %v1712
    %1784 = vmatpush.msra.mxu0 %v1711
    %1785 = vmatpush.msra.mxu0 %v1710
    %1786 = vmatmul.f32.gmra.mxu0 %v1676
    %v1787 = vpop.f32.mrf.mxu0
    %v1788 = vadd.f32 %v1768, %v1787
    %1789 = vdwg.mxu0
    %1790 = vst [vmem:[#allocation10] sm:$0xff] %v1788
    // Predicated region
    $region38: #{tpu_custom_call.1} parent=1 // pred_check
      _
    $region39: #{tpu_custom_call.1} parent=1 // pred_check_branch
      %1792 = sbr.rel (0) target = $region41
    $region40: #{tpu_custom_call.1} parent=1 // pred_region
      %1794 = vsyncadd [#allocation4], 0
      %s1796 = sshll.u32 [#allocation10], 4
      %s1797 = int_to_ptr.vmem [resolvable:$true] %s1796
      %s1798 = sshll.u32 %s5, 4
      %s1799 = int_to_ptr.hbm [resolvable:$true] %s1798
      %1801 = dma.vmem_to_hbm [thread:$0]  %s1797, 128, %s1799, [#allocation4]
    $region41: #{tpu_custom_call.1} parent=1 // pred_fallthru
      _
    // Predicated region
    $region42: #{tpu_custom_call.1} parent=1 // pred_check
      _
    $region43: #{tpu_custom_call.1} parent=1 // pred_check_branch
      %1803 = sbr.rel (0) target = $region45
    $region44: #{tpu_custom_call.1} parent=1 // pred_region
      %1805 = dma.done [#allocation4], 128
    $region45: #{tpu_custom_call.1} parent=1 // pred_fallthru
      _
    %1806 = vsyncpa [#allocation3], 1
    %1807 = vsyncpa [#allocation6], 1
    %1808 = vsyncpa [#allocation9], 1
    %1809 = vsyncpa [#allocation4], 1

</llo_original>
